<compile_context>
chip_gen: v5e
topology: v5e:2x2
jax: 0.10.0
libtpu: 0.0.40
codegen_flags: <defaults>
</compile_context>

<pallas_src>
import functools

import jax
import jax.numpy as jnp
from jax import lax
from jax.experimental import pallas as pl
from jax.experimental.pallas import tpu as pltpu


def _round_up(x, m):
    return (x + m - 1) // m * m


def _tpu_params():
    """(num_tensorcores, vmem_budget_bytes) for the current backend."""
    try:
        kind = jax.devices()[0].device_kind.lower()
    except Exception:
        kind = ""
    num_cores = 2 if "v7" in kind else 1        # v7x: 2 TCs/chip; v5e/v6e: 1
    try:
        cap = int(pltpu.get_tpu_info().vmem_capacity_bytes)
    except Exception:
        cap = (64 if "v7" in kind else 128) * 1024 * 1024
    # Leave headroom for compiler scratch / surrounding fusions.
    budget = min(int(0.72 * cap), 100 * 1024 * 1024)
    return num_cores, budget


# --------------------------------------------------------------------------
# Fast path: whole-image direct conv, patch extraction inside the kernel.
# --------------------------------------------------------------------------
def _img_conv_kernel(x_ref, w_ref, scale_ref, bias_ref, o_ref, *,
                     kh, kw, dilation, wp, m_img):
    # x_ref:     (1, Hp2*Wp, C)     bf16 flattened padded NHWC image
    # w_ref:     (KH*KW, C, OCP)    bf16 weight (full, resident)
    # scale_ref: (1, OCP)  f32      BN scale   (applied to f32 accumulator)
    # bias_ref:  (1, OCP)  f32      BN bias
    # o_ref:     (1, OH*Wp, OCP)    bf16 output (lane-dense; OCP % 128 == 0)
    ocp = o_ref.shape[-1]
    acc = jnp.zeros((m_img, ocp), jnp.float32)
    for r in range(kh * kw):                      # static unroll (e.g. 9 for 3x3)
        dh, dw = divmod(r, kw)
        s = dh * dilation * wp + dw * dilation    # static flat row offset
        patch = x_ref[0, s:s + m_img, :]          # (M_img, C) contiguous slice
        acc = acc + jnp.dot(patch, w_ref[r],
                            preferred_element_type=jnp.float32)
    y = acc * scale_ref[...] + bias_ref[...]
    o_ref[0] = jnp.maximum(y, 0.0).astype(o_ref.dtype)


# --------------------------------------------------------------------------
# Fallback path: im2col + tiled matmul (stride > 1 or image too big for VMEM).
# --------------------------------------------------------------------------
def _mm_kernel_nk1(p_ref, w_ref, scale_ref, bias_ref, o_ref):
    # Single-K-block path: no accumulator scratch, direct write.
    acc = jnp.dot(p_ref[...], w_ref[...], preferred_element_type=jnp.float32)
    y = acc * scale_ref[...] + bias_ref[...]
    o_ref[...] = jnp.maximum(y, 0.0).astype(o_ref.dtype)


def _mm_kernel(p_ref, w_ref, scale_ref, bias_ref, o_ref, acc_ref):
    kk = pl.program_id(2)

    @pl.when(kk == 0)
    def _():
        acc_ref[...] = jnp.zeros_like(acc_ref)

    acc_ref[...] += jnp.dot(p_ref[...], w_ref[...],
                            preferred_element_type=jnp.float32)

    @pl.when(kk == pl.num_programs(2) - 1)
    def _():
        y = acc_ref[...] * scale_ref[...] + bias_ref[...]
        o_ref[...] = jnp.maximum(y, 0.0).astype(o_ref.dtype)


def _im2col(x_bf, kh, kw, stride, padding, dilation, oh, ow):
    """bf16 x (N, C, H, W) -> (N*OH*OW, C*KH*KW) bf16 patches."""
    n, c, h, w = x_bf.shape
    if kh == 1 and kw == 1 and padding == 0:
        p = x_bf[:, :, ::stride, ::stride]
        return p.transpose(0, 2, 3, 1).reshape(n * oh * ow, c)
    xp = jnp.pad(x_bf, ((0, 0), (0, 0), (padding, padding), (padding, padding)))
    cols = []
    for i in range(kh):
        for j in range(kw):
            cols.append(xp[:, :,
                           i * dilation: i * dilation + stride * oh: stride,
                           j * dilation: j * dilation + stride * ow: stride])
    p = jnp.stack(cols, axis=0)                  # (KH*KW, N, C, OH, OW)
    p = p.transpose(1, 3, 4, 2, 0)               # (N, OH, OW, C, KH*KW)
    return p.reshape(n * oh * ow, c * kh * kw)   # K ordered (c, kh, kw)


def _conv_im2col_path(x_bf, weight, scale_p, bias_p, *, stride, padding,
                      dilation, oh, ow, oc, oc_pad, num_cores, vmem_budget):
    n, c = x_bf.shape[0], x_bf.shape[1]
    kh, kw = weight.shape[2], weight.shape[3]
    patches = _im2col(x_bf, kh, kw, stride, padding, dilation, oh, ow)
    m, k = patches.shape

    # (OC, C, KH, KW) -> (K, OC), K ordered (c, kh, kw); BN scale NOT folded.
    w2d = weight.reshape(oc, c * kh * kw).T
    w2d = jnp.pad(w2d, ((0, 0), (0, oc_pad - oc))).astype(jnp.bfloat16)

    tn = 256 if oc_pad >= 512 else oc_pad
    noc = oc_pad // tn

    # ---- K blocking ----
    if k <= 2048:
        tk, k_pad, nk = k, k, 1
    else:
        tk = 2048
        while tk > 512 and 2 * tk * tn * 2 > vmem_budget // 4:
            tk //= 2
        k_pad = _round_up(k, tk)
        if k_pad != k:
            patches = jnp.pad(patches, ((0, 0), (0, k_pad - k)))
            w2d = jnp.pad(w2d, ((0, k_pad - k), (0, 0)))
        nk = k_pad // tk

    # ---- M tile ----
    tm = min(1024, _round_up(m, 8))

    def est(tm_):
        return (2 * tm_ * tk * 2      # patches bf16, double-buffered
                + 2 * tk * tn * 2     # weight bf16, double-buffered
                + 2 * tm_ * tn * 2    # output bf16, double-buffered
                + (tm_ * tn * 4 if nk > 1 else 0)   # f32 accumulator scratch
                + 4 * tn * 4)
    while tm > 128 and est(tm) > int(0.6 * vmem_budget):
        tm = max(128, _round_up(tm // 2, 8))
    if num_cores > 1 and (pl.cdiv(m, tm) * noc) % num_cores != 0:
        # Even the parallel tile count across the 2 v7x TensorCores.
        t = tm
        while t > 128:
            t = max(128, _round_up(t // 2, 8))
            if (pl.cdiv(m, t) * noc) % num_cores == 0:
                tm = t
                break
    nm = pl.cdiv(m, tm)

    if nk == 1:
        grid = (nm, noc)
        in_specs = [
            pl.BlockSpec((tm, tk), lambda i, j: (i, 0)),
            pl.BlockSpec((tk, tn), lambda i, j: (0, j)),
            pl.BlockSpec((1, tn), lambda i, j: (0, j)),
            pl.BlockSpec((1, tn), lambda i, j: (0, j)),
        ]
        out_spec = pl.BlockSpec((tm, tn), lambda i, j: (i, j))
        scratch = []
        kernel = _mm_kernel_nk1
        semantics = ("parallel", "parallel")
    else:
        grid = (nm, noc, nk)
        in_specs = [
            pl.BlockSpec((tm, tk), lambda i, j, kk: (i, kk)),
            pl.BlockSpec((tk, tn), lambda i, j, kk: (kk, j)),
            pl.BlockSpec((1, tn), lambda i, j, kk: (0, j)),
            pl.BlockSpec((1, tn), lambda i, j, kk: (0, j)),
        ]
        out_spec = pl.BlockSpec((tm, tn), lambda i, j, kk: (i, j))
        scratch = [pltpu.VMEM((tm, tn), jnp.float32)]
        kernel = _mm_kernel
        semantics = ("parallel", "parallel", "arbitrary")

    cost = pl.CostEstimate(
        flops=2 * m * k_pad * oc_pad, transcendentals=0,
        bytes_accessed=m * k_pad * 2 + k_pad * oc_pad * 2 + m * oc_pad * 2)

    out_flat = pl.pallas_call(
        kernel,
        out_shape=jax.ShapeDtypeStruct((m, oc_pad), jnp.bfloat16),
        grid_spec=pltpu.PrefetchScalarGridSpec(
            num_scalar_prefetch=0, grid=grid,
            in_specs=in_specs, out_specs=out_spec, scratch_shapes=scratch),
        compiler_params=pltpu.CompilerParams(
            dimension_semantics=semantics, vmem_limit_bytes=vmem_budget),
        cost_estimate=cost,
    )(patches, w2d, scale_p, bias_p)

    return out_flat[:, :oc].reshape(n, oh, ow, oc)       # NHWC bf16


# --------------------------------------------------------------------------
# Public wrapper (matches the PyTorch module's forward semantics).
# --------------------------------------------------------------------------
@functools.partial(jax.jit, static_argnames=("stride", "padding", "dilation",
                                             "eps", "output_format"))
def basic_conv2d(x, weight, gamma, beta, running_mean, running_var, *,
                 stride=1, padding=0, dilation=1, eps=1e-5,
                 output_format="NCHW"):
    """Conv2d(no bias) -> BatchNorm2d(running stats) -> ReLU.

    x: (N, C, H, W).  Output is bf16, NCHW by default; pass
    output_format="NHWC" when chaining layers to skip the transpose copy.
    """
    assert output_format in ("NCHW", "NHWC")
    n, c, h, w = x.shape
    oc, _, kh, kw = weight.shape
    oh = (h + 2 * padding - dilation * (kh - 1) - 1) // stride + 1
    ow = (w + 2 * padding - dilation * (kw - 1) - 1) // stride + 1

    num_cores, vmem_budget = _tpu_params()

    # BN (inference) as per-channel f32 scale/bias, applied in-kernel.
    scale = (gamma / jnp.sqrt(running_var + eps)).astype(jnp.float32)
    bias = (beta.astype(jnp.float32) - running_mean.astype(jnp.float32) * scale)

    oc_pad = _round_up(oc, 128)
    if oc_pad >= 512:
        oc_pad = _round_up(oc_pad, 256)   # 256-wide output tiles for v6e/v7x MXU
    scale_p = jnp.pad(scale, (0, oc_pad - oc)).reshape(1, oc_pad)
    bias_p = jnp.pad(bias, (0, oc_pad - oc)).reshape(1, oc_pad)

    x_bf = x.astype(jnp.bfloat16)        # cast BEFORE any layout glue (half traffic)

    # ---------------- fast path: in-kernel patch extraction ----------------
    use_direct = (stride == 1)
    if use_direct:
        hp, wp = h + 2 * padding, w + 2 * padding
        extra_h = -(-(dilation * (kw - 1)) // wp) if kw > 1 else 0
        hp2 = hp + extra_h
        m_img = oh * wp
        est = (2 * hp2 * wp * c * 2          # image block bf16, double-buffered
               + kh * kw * c * oc_pad * 2    # weight (resident)
               + 2 * m_img * oc_pad * 2      # bf16 output, double-buffered
               + 2 * m_img * oc_pad * 4)     # f32 accumulator + dot temp
        if est > int(0.6 * vmem_budget):
            use_direct = False
    # TODO(synk): stride > 1 and very large images still take the im2col path;
    # a halo-tiled / OC-tiled in-kernel variant would cover those too.

    if use_direct:
        xp = jnp.transpose(x_bf, (0, 2, 3, 1))                     # NHWC
        xp = jnp.pad(xp, ((0, 0), (padding, padding + extra_h),
                          (padding, padding), (0, 0)))
        xp = xp.reshape(n, hp2 * wp, c)                            # free reshape

        wk = jnp.transpose(weight, (2, 3, 1, 0)).reshape(kh * kw, c, oc)
        wk = jnp.pad(wk, ((0, 0), (0, 0), (0, oc_pad - oc))).astype(jnp.bfloat16)

        kernel = functools.partial(_img_conv_kernel, kh=kh, kw=kw,
                                   dilation=dilation, wp=wp, m_img=m_img)
        cost = pl.CostEstimate(
            flops=2 * n * m_img * c * kh * kw * oc_pad,
            transcendentals=0,
            bytes_accessed=(n * hp2 * wp * c * 2 + kh * kw * c * oc_pad * 2
                            + n * m_img * oc_pad * 2))

        out_flat = pl.pallas_call(
            kernel,
            out_shape=jax.ShapeDtypeStruct((n, m_img, oc_pad), jnp.bfloat16),
            grid_spec=pltpu.PrefetchScalarGridSpec(
                num_scalar_prefetch=0,
                grid=(n,),
                in_specs=[
                    pl.BlockSpec((1, hp2 * wp, c), lambda i: (i, 0, 0)),
                    pl.BlockSpec((kh * kw, c, oc_pad), lambda i: (0, 0, 0)),
                    pl.BlockSpec((1, oc_pad), lambda i: (0, 0)),
                    pl.BlockSpec((1, oc_pad), lambda i: (0, 0)),
                ],
                out_specs=pl.BlockSpec((1, m_img, oc_pad), lambda i: (i, 0, 0)),
            ),
            compiler_params=pltpu.CompilerParams(
                dimension_semantics=("parallel",),
                vmem_limit_bytes=vmem_budget),
            cost_estimate=cost,
        )(xp, wk, scale_p, bias_p)

        # Drop the Wp-OW garbage columns and the OC padding (fuses with the
        # NCHW transpose copy below when output_format == "NCHW").
        out_nhwc = out_flat.reshape(n, oh, wp, oc_pad)[:, :, :ow, :oc]
    else:
        out_nhwc = _conv_im2col_path(
            x_bf, weight, scale_p, bias_p, stride=stride, padding=padding,
            dilation=dilation, oh=oh, ow=ow, oc=oc, oc_pad=oc_pad,
            num_cores=num_cores, vmem_budget=vmem_budget)

    if output_format == "NHWC":
        return out_nhwc
    return jnp.transpose(out_nhwc, (0, 3, 1, 2))                   # NCHW


# --------------------------------------------------------------------------
# Reference (pure XLA) and test.
# --------------------------------------------------------------------------
def reference(x, weight, gamma, beta, running_mean, running_var,
              *, stride, padding, dilation, eps=1e-5):
    y = lax.conv_general_dilated(
        x, weight,
        window_strides=(stride, stride),
        padding=((padding, padding), (padding, padding)),
        rhs_dilation=(dilation, dilation),
        dimension_numbers=("NCHW", "OIHW", "NCHW"))
    scale = (gamma / jnp.sqrt(running_var + eps)).reshape(1, -1, 1, 1)
    shift = (beta - running_mean * gamma / jnp.sqrt(running_var + eps)
             ).reshape(1, -1, 1, 1)
    return jnp.maximum(y * scale + shift, 0.0)


if __name__ == "__main__":
    key = jax.random.PRNGKey(0)
    k1, k2, k3, k4, k5, k6 = jax.random.split(key, 6)

    # BasicConv2d(in_planes=4, out_planes=8, kernel_size=3, padding=1)
    N, C, H, W = 2, 4, 16, 16
    OC, KH, KW = 8, 3, 3

    x = jax.random.normal(k1, (N, C, H, W), dtype=jnp.float32)
    weight = jax.random.normal(k2, (OC, C, KH, KW), dtype=jnp.float32) * 0.1
    gamma = jax.random.uniform(k3, (OC,), minval=0.5, maxval=1.5)
    beta = jax.random.normal(k4, (OC,)) * 0.1
    running_mean = jax.random.normal(k5, (OC,)) * 0.1
    running_var = jax.random.uniform(k6, (OC,), minval=0.5, maxval=1.5)

    # 1) stride=1, padding=1 (default BasicConv2d usage) -> in-kernel direct path.
    out = basic_conv2d(x, weight, gamma, beta, running_mean, running_var,
                       stride=1, padding=1, dilation=1)
    out = jax.block_until_ready(out)
    ref = reference(x, weight, gamma, beta, running_mean, running_var,
                    stride=1, padding=1, dilation=1)
    assert out.shape == (N, OC, H, W), out.shape
    assert jnp.allclose(out.astype(jnp.float32), ref, atol=5e-2, rtol=5e-2), \
        float(jnp.max(jnp.abs(out.astype(jnp.float32) - ref)))

    # 2) stride=2 -> exercises the im2col matmul fallback path.
    out2 = basic_conv2d(x, weight, gamma, beta, running_mean, running_var,
                        stride=2, padding=1, dilation=1)
    out2 = jax.block_until_ready(out2)
    ref2 = reference(x, weight, gamma, beta, running_mean, running_var,
                     stride=2, padding=1, dilation=1)
    assert out2.shape == ref2.shape, (out2.shape, ref2.shape)
    assert jnp.allclose(out2.astype(jnp.float32), ref2, atol=5e-2, rtol=5e-2), \
        float(jnp.max(jnp.abs(out2.astype(jnp.float32) - ref2)))

    print("KERNEL_OK")
</pallas_src>

<mosaic_0001>
module attributes {stable_mosaic.version = 11 : i64} {
  func.func @_img_conv_kernel(%arg0: i32, %arg1: memref<1x342x4xbf16, #tpu.memory_space<vmem>>, %arg2: memref<9x4x128xbf16, #tpu.memory_space<vmem>>, %arg3: memref<1x128xf32, #tpu.memory_space<vmem>>, %arg4: memref<1x128xf32, #tpu.memory_space<vmem>>, %arg5: memref<1x288x128xbf16, #tpu.memory_space<vmem>>) attributes {dimension_semantics = [#tpu.dimension_semantics<parallel>], iteration_bounds = array<i64: 2>, scalar_prefetch = 0 : i64, scratch_operands = 0 : i64, tpu.core_type = #tpu.core_type<tc>, window_params = [{transform_indices = @transform_0, window_bounds = array<i64: 1, 342, 4>}, {pipeline_mode = #tpu.pipeline_mode<synchronous>, transform_indices = @transform_1, window_bounds = array<i64: 9, 4, 128>}, {pipeline_mode = #tpu.pipeline_mode<synchronous>, transform_indices = @transform_2, window_bounds = array<i64: 1, 128>}, {pipeline_mode = #tpu.pipeline_mode<synchronous>, transform_indices = @transform_3, window_bounds = array<i64: 1, 128>}, {transform_indices = @transform_4, window_bounds = array<i64: 1, 288, 128>}]} {
    %cst = arith.constant 0.000000e+00 : f32
    %0 = vector.broadcast %cst : f32 to vector<288x128xf32>
    %c0 = arith.constant 0 : index
    %c0_0 = arith.constant 0 : index
    %c0_1 = arith.constant 0 : index
    %1 = vector.load %arg1[%c0, %c0_0, %c0_1] : memref<1x342x4xbf16, #tpu.memory_space<vmem>>, vector<1x288x4xbf16>
    %2 = vector.shape_cast %1 : vector<1x288x4xbf16> to vector<288x4xbf16>
    %c0_2 = arith.constant 0 : index
    %c0_3 = arith.constant 0 : index
    %c0_4 = arith.constant 0 : index
    %3 = vector.load %arg2[%c0_2, %c0_3, %c0_4] : memref<9x4x128xbf16, #tpu.memory_space<vmem>>, vector<1x4x128xbf16>
    %4 = vector.shape_cast %3 : vector<1x4x128xbf16> to vector<4x128xbf16>
    %cst_5 = arith.constant dense<0.000000e+00> : vector<288x128xf32>
    %5 = tpu.matmul %2, %4, %cst_5 {dimension_numbers = #tpu.dot_dimension_numbers<[1], [0], [0], [1], [0, 0, 1, 1], [], []>} : vector<288x4xbf16>, vector<4x128xbf16>, vector<288x128xf32> -> vector<288x128xf32>
    %6 = arith.addf %0, %5 : vector<288x128xf32>
    %c0_6 = arith.constant 0 : index
    %c1 = arith.constant 1 : index
    %c0_7 = arith.constant 0 : index
    %7 = vector.load %arg1[%c0_6, %c1, %c0_7] : memref<1x342x4xbf16, #tpu.memory_space<vmem>>, vector<1x288x4xbf16>
    %8 = vector.shape_cast %7 : vector<1x288x4xbf16> to vector<288x4xbf16>
    %c1_8 = arith.constant 1 : index
    %c0_9 = arith.constant 0 : index
    %c0_10 = arith.constant 0 : index
    %9 = vector.load %arg2[%c1_8, %c0_9, %c0_10] : memref<9x4x128xbf16, #tpu.memory_space<vmem>>, vector<1x4x128xbf16>
    %10 = vector.shape_cast %9 : vector<1x4x128xbf16> to vector<4x128xbf16>
    %cst_11 = arith.constant dense<0.000000e+00> : vector<288x128xf32>
    %11 = tpu.matmul %8, %10, %cst_11 {dimension_numbers = #tpu.dot_dimension_numbers<[1], [0], [0], [1], [0, 0, 1, 1], [], []>} : vector<288x4xbf16>, vector<4x128xbf16>, vector<288x128xf32> -> vector<288x128xf32>
    %12 = arith.addf %6, %11 : vector<288x128xf32>
    %c0_12 = arith.constant 0 : index
    %c2 = arith.constant 2 : index
    %c0_13 = arith.constant 0 : index
    %13 = vector.load %arg1[%c0_12, %c2, %c0_13] : memref<1x342x4xbf16, #tpu.memory_space<vmem>>, vector<1x288x4xbf16>
    %14 = vector.shape_cast %13 : vector<1x288x4xbf16> to vector<288x4xbf16>
    %c2_14 = arith.constant 2 : index
    %c0_15 = arith.constant 0 : index
    %c0_16 = arith.constant 0 : index
    %15 = vector.load %arg2[%c2_14, %c0_15, %c0_16] : memref<9x4x128xbf16, #tpu.memory_space<vmem>>, vector<1x4x128xbf16>
    %16 = vector.shape_cast %15 : vector<1x4x128xbf16> to vector<4x128xbf16>
    %cst_17 = arith.constant dense<0.000000e+00> : vector<288x128xf32>
    %17 = tpu.matmul %14, %16, %cst_17 {dimension_numbers = #tpu.dot_dimension_numbers<[1], [0], [0], [1], [0, 0, 1, 1], [], []>} : vector<288x4xbf16>, vector<4x128xbf16>, vector<288x128xf32> -> vector<288x128xf32>
    %18 = arith.addf %12, %17 : vector<288x128xf32>
    %c0_18 = arith.constant 0 : index
    %c18 = arith.constant 18 : index
    %c0_19 = arith.constant 0 : index
    %19 = vector.load %arg1[%c0_18, %c18, %c0_19] : memref<1x342x4xbf16, #tpu.memory_space<vmem>>, vector<1x288x4xbf16>
    %20 = vector.shape_cast %19 : vector<1x288x4xbf16> to vector<288x4xbf16>
    %c3 = arith.constant 3 : index
    %c0_20 = arith.constant 0 : index
    %c0_21 = arith.constant 0 : index
    %21 = vector.load %arg2[%c3, %c0_20, %c0_21] : memref<9x4x128xbf16, #tpu.memory_space<vmem>>, vector<1x4x128xbf16>
    %22 = vector.shape_cast %21 : vector<1x4x128xbf16> to vector<4x128xbf16>
    %cst_22 = arith.constant dense<0.000000e+00> : vector<288x128xf32>
    %23 = tpu.matmul %20, %22, %cst_22 {dimension_numbers = #tpu.dot_dimension_numbers<[1], [0], [0], [1], [0, 0, 1, 1], [], []>} : vector<288x4xbf16>, vector<4x128xbf16>, vector<288x128xf32> -> vector<288x128xf32>
    %24 = arith.addf %18, %23 : vector<288x128xf32>
    %c0_23 = arith.constant 0 : index
    %c19 = arith.constant 19 : index
    %c0_24 = arith.constant 0 : index
    %25 = vector.load %arg1[%c0_23, %c19, %c0_24] : memref<1x342x4xbf16, #tpu.memory_space<vmem>>, vector<1x288x4xbf16>
    %26 = vector.shape_cast %25 : vector<1x288x4xbf16> to vector<288x4xbf16>
    %c4 = arith.constant 4 : index
    %c0_25 = arith.constant 0 : index
    %c0_26 = arith.constant 0 : index
    %27 = vector.load %arg2[%c4, %c0_25, %c0_26] : memref<9x4x128xbf16, #tpu.memory_space<vmem>>, vector<1x4x128xbf16>
    %28 = vector.shape_cast %27 : vector<1x4x128xbf16> to vector<4x128xbf16>
    %cst_27 = arith.constant dense<0.000000e+00> : vector<288x128xf32>
    %29 = tpu.matmul %26, %28, %cst_27 {dimension_numbers = #tpu.dot_dimension_numbers<[1], [0], [0], [1], [0, 0, 1, 1], [], []>} : vector<288x4xbf16>, vector<4x128xbf16>, vector<288x128xf32> -> vector<288x128xf32>
    %30 = arith.addf %24, %29 : vector<288x128xf32>
    %c0_28 = arith.constant 0 : index
    %c20 = arith.constant 20 : index
    %c0_29 = arith.constant 0 : index
    %31 = vector.load %arg1[%c0_28, %c20, %c0_29] : memref<1x342x4xbf16, #tpu.memory_space<vmem>>, vector<1x288x4xbf16>
    %32 = vector.shape_cast %31 : vector<1x288x4xbf16> to vector<288x4xbf16>
    %c5 = arith.constant 5 : index
    %c0_30 = arith.constant 0 : index
    %c0_31 = arith.constant 0 : index
    %33 = vector.load %arg2[%c5, %c0_30, %c0_31] : memref<9x4x128xbf16, #tpu.memory_space<vmem>>, vector<1x4x128xbf16>
    %34 = vector.shape_cast %33 : vector<1x4x128xbf16> to vector<4x128xbf16>
    %cst_32 = arith.constant dense<0.000000e+00> : vector<288x128xf32>
    %35 = tpu.matmul %32, %34, %cst_32 {dimension_numbers = #tpu.dot_dimension_numbers<[1], [0], [0], [1], [0, 0, 1, 1], [], []>} : vector<288x4xbf16>, vector<4x128xbf16>, vector<288x128xf32> -> vector<288x128xf32>
    %36 = arith.addf %30, %35 : vector<288x128xf32>
    %c0_33 = arith.constant 0 : index
    %c36 = arith.constant 36 : index
    %c0_34 = arith.constant 0 : index
    %37 = vector.load %arg1[%c0_33, %c36, %c0_34] : memref<1x342x4xbf16, #tpu.memory_space<vmem>>, vector<1x288x4xbf16>
    %38 = vector.shape_cast %37 : vector<1x288x4xbf16> to vector<288x4xbf16>
    %c6 = arith.constant 6 : index
    %c0_35 = arith.constant 0 : index
    %c0_36 = arith.constant 0 : index
    %39 = vector.load %arg2[%c6, %c0_35, %c0_36] : memref<9x4x128xbf16, #tpu.memory_space<vmem>>, vector<1x4x128xbf16>
    %40 = vector.shape_cast %39 : vector<1x4x128xbf16> to vector<4x128xbf16>
    %cst_37 = arith.constant dense<0.000000e+00> : vector<288x128xf32>
    %41 = tpu.matmul %38, %40, %cst_37 {dimension_numbers = #tpu.dot_dimension_numbers<[1], [0], [0], [1], [0, 0, 1, 1], [], []>} : vector<288x4xbf16>, vector<4x128xbf16>, vector<288x128xf32> -> vector<288x128xf32>
    %42 = arith.addf %36, %41 : vector<288x128xf32>
    %c0_38 = arith.constant 0 : index
    %c37 = arith.constant 37 : index
    %c0_39 = arith.constant 0 : index
    %43 = vector.load %arg1[%c0_38, %c37, %c0_39] : memref<1x342x4xbf16, #tpu.memory_space<vmem>>, vector<1x288x4xbf16>
    %44 = vector.shape_cast %43 : vector<1x288x4xbf16> to vector<288x4xbf16>
    %c7 = arith.constant 7 : index
    %c0_40 = arith.constant 0 : index
    %c0_41 = arith.constant 0 : index
    %45 = vector.load %arg2[%c7, %c0_40, %c0_41] : memref<9x4x128xbf16, #tpu.memory_space<vmem>>, vector<1x4x128xbf16>
    %46 = vector.shape_cast %45 : vector<1x4x128xbf16> to vector<4x128xbf16>
    %cst_42 = arith.constant dense<0.000000e+00> : vector<288x128xf32>
    %47 = tpu.matmul %44, %46, %cst_42 {dimension_numbers = #tpu.dot_dimension_numbers<[1], [0], [0], [1], [0, 0, 1, 1], [], []>} : vector<288x4xbf16>, vector<4x128xbf16>, vector<288x128xf32> -> vector<288x128xf32>
    %48 = arith.addf %42, %47 : vector<288x128xf32>
    %c0_43 = arith.constant 0 : index
    %c38 = arith.constant 38 : index
    %c0_44 = arith.constant 0 : index
    %49 = vector.load %arg1[%c0_43, %c38, %c0_44] : memref<1x342x4xbf16, #tpu.memory_space<vmem>>, vector<1x288x4xbf16>
    %50 = vector.shape_cast %49 : vector<1x288x4xbf16> to vector<288x4xbf16>
    %c8 = arith.constant 8 : index
    %c0_45 = arith.constant 0 : index
    %c0_46 = arith.constant 0 : index
    %51 = vector.load %arg2[%c8, %c0_45, %c0_46] : memref<9x4x128xbf16, #tpu.memory_space<vmem>>, vector<1x4x128xbf16>
    %52 = vector.shape_cast %51 : vector<1x4x128xbf16> to vector<4x128xbf16>
    %cst_47 = arith.constant dense<0.000000e+00> : vector<288x128xf32>
    %53 = tpu.matmul %50, %52, %cst_47 {dimension_numbers = #tpu.dot_dimension_numbers<[1], [0], [0], [1], [0, 0, 1, 1], [], []>} : vector<288x4xbf16>, vector<4x128xbf16>, vector<288x128xf32> -> vector<288x128xf32>
    %54 = arith.addf %48, %53 : vector<288x128xf32>
    %c0_48 = arith.constant 0 : index
    %c0_49 = arith.constant 0 : index
    %55 = vector.load %arg3[%c0_48, %c0_49] : memref<1x128xf32, #tpu.memory_space<vmem>>, vector<1x128xf32>
    %56 = vector.broadcast %55 : vector<1x128xf32> to vector<288x128xf32>
    %57 = arith.mulf %54, %56 : vector<288x128xf32>
    %c0_50 = arith.constant 0 : index
    %c0_51 = arith.constant 0 : index
    %58 = vector.load %arg4[%c0_50, %c0_51] : memref<1x128xf32, #tpu.memory_space<vmem>>, vector<1x128xf32>
    %59 = vector.broadcast %58 : vector<1x128xf32> to vector<288x128xf32>
    %60 = arith.addf %57, %59 : vector<288x128xf32>
    %cst_52 = arith.constant 0.000000e+00 : f32
    %61 = vector.broadcast %cst_52 : f32 to vector<288x128xf32>
    %62 = arith.maximumf %60, %61 : vector<288x128xf32>
    %63 = arith.truncf %62 : vector<288x128xf32> to vector<288x128xbf16>
    %c0_53 = arith.constant 0 : index
    %c0_54 = arith.constant 0 : index
    %c0_55 = arith.constant 0 : index
    %64 = vector.load %arg5[%c0_53, %c0_54, %c0_55] : memref<1x288x128xbf16, #tpu.memory_space<vmem>>, vector<1x288x128xbf16>
    %65 = vector.shape_cast %64 : vector<1x288x128xbf16> to vector<288x128xbf16>
    %66 = vector.shape_cast %63 : vector<288x128xbf16> to vector<1x288x128xbf16>
    tpu.vector_store %arg5[%c0_53, %c0_54, %c0_55], %66 {strides = array<i32>} : memref<1x288x128xbf16, #tpu.memory_space<vmem>>, vector<1x288x128xbf16>,
    return
  }
  func.func @transform_0(%arg0: i32) -> (i32, i32, i32) {
    %c0_i32 = arith.constant 0 : i32
    %c0_i32_0 = arith.constant 0 : i32
    %c0_i32_1 = arith.constant 0 : i32
    return %arg0, %c0_i32, %c0_i32_0 : i32, i32, i32
  }
  func.func @transform_1(%arg0: i32) -> (i32, i32, i32) {
    %c0_i32 = arith.constant 0 : i32
    %c0_i32_0 = arith.constant 0 : i32
    %c0_i32_1 = arith.constant 0 : i32
    %c0_i32_2 = arith.constant 0 : i32
    return %c0_i32, %c0_i32_0, %c0_i32_1 : i32, i32, i32
  }
  func.func @transform_2(%arg0: i32) -> (i32, i32) {
    %c0_i32 = arith.constant 0 : i32
    %c0_i32_0 = arith.constant 0 : i32
    %c0_i32_1 = arith.constant 0 : i32
    return %c0_i32, %c0_i32_0 : i32, i32
  }
  func.func @transform_3(%arg0: i32) -> (i32, i32) {
    %c0_i32 = arith.constant 0 : i32
    %c0_i32_0 = arith.constant 0 : i32
    %c0_i32_1 = arith.constant 0 : i32
    return %c0_i32, %c0_i32_0 : i32, i32
  }
  func.func @transform_4(%arg0: i32) -> (i32, i32, i32) {
    %c0_i32 = arith.constant 0 : i32
    %c0_i32_0 = arith.constant 0 : i32
    %c0_i32_1 = arith.constant 0 : i32
    return %arg0, %c0_i32, %c0_i32_0 : i32, i32, i32
  }
}

</mosaic_0001>

<llo_original>
// kernel: basic_conv2d.1
$region0: #{basic_conv2d.1}
  #allocation0 [shape = 'u32[]', space=smem, size = 0x4, offset = 0x4, fixed_abs, tag = 'smem constant byte address 0x4 - core index']
  #allocation1 [shape = 'u32[72,128]{1,0:T(1,128)}', space=vmem, size = 0x9000, scoped, tag = 'internal scratch']
  %s0 = inlined_call_operand.vmem [shape: bf16[2,342,4], index: 0, kind: input, shape index: {}]
  %s1 = inlined_call_operand.vmem [shape: bf16[9,4,128], index: 1, kind: input, shape index: {}]
  %s2 = inlined_call_operand.vmem [shape: f32[1,128], index: 2, kind: input, shape index: {}]
  %s3 = inlined_call_operand.vmem [shape: f32[1,128], index: 3, kind: input, shape index: {}]
  %s4 = inlined_call_operand.vmem [shape: bf16[2,288,128], index: 4, kind: output, shape index: {}]
  %s5 = sld [smem:[#allocation0]]
  $region49: #{basic_conv2d.1} parent=0
    _
  %s7 = ssub.s32 1, %s5
  %s8 = scalar_select 0, %s7, %s5
  loop: start=0, step=1, limit=4
  $region2: #{basic_conv2d.1} parent=0 // loop_pre_header
    _
  $region3: #{basic_conv2d.1} parent=0 // loop_header
    %s10 = sphi 0, %s14
    %p11 = scmp.ge.s32.totalorder %s10, 4
    %s20 = sphi 0, %s22
    %s23 = sphi 0, %s20
    %s24 = sphi 0, %s23
    %s40 = sphi 0, %s24
    %s44 = sphi 0, %s44
    %s46 = sphi 0, %s44
    %s47 = sphi 0, %s46
    %s61 = sphi 0, %s47
    %s65 = sphi 0, %s65
    %s67 = sphi 0, %s65
    %s68 = sphi 0, %s67
    %s82 = sphi 0, %s68
    %s86 = sphi 0, %s86
    %s88 = sphi 0, %s86
    %s89 = sphi 0, %s88
    %s103 = sphi 0, %s89
    %s109 = sphi 0, %s111
    %s112 = sphi 0, %s109
    %s113 = sphi 0, %s112
    %s129 = sphi 0, %s113
  $region4: #{basic_conv2d.1} parent=0 // loop_header_branch
    %13 = sbr.rel (%p11) target = $region8
  $region5: #{basic_conv2d.1} parent=0 // loop_body
    %s15 = ssub.s32 %s10, 1
    %s16 = ssub.s32 %s10, 2
    %s17 = sadd.s32 %s10, 1
    %s18 = ssub.s32 %s10, %s17
    %p19 = scmp.eq.s32.totalorder %s18, 0
    %s21 = sadd.s32 %s20, 1
    %s22 = scalar_select %p19, %s20, %s21
    %p25 = pneg %p19
    %p26 = scmp.eq.s32.totalorder %s10, 1
    %p27 = por %p25, %p26
    %p28 = scmp.ne.s32.totalorder %s20, %s23
    %p29 = scmp.eq.s32.totalorder %s10, 0
    %p30 = por %p28, %p29
    %p31 = scmp.ne.s32.totalorder %s20, %s23
    %p32 = scmp.eq.s32.totalorder %s15, 1
    %p33 = por %p31, %p32
    %p34 = scmp.ne.s32.totalorder %s23, %s24
    %p35 = scmp.eq.s32.totalorder %s15, 0
    %p36 = por %p34, %p35
    %p37 = scmp.ne.s32.totalorder %s23, %s24
    %p38 = scmp.eq.s32.totalorder %s16, 1
    %p39 = por %p37, %p38
    %p41 = scmp.ne.s32.totalorder %s24, %s40
    %p42 = scmp.eq.s32.totalorder %s16, 0
    %p43 = por %p41, %p42
    %s45 = sadd.s32 %s44, 1
    %p48 = scmp.eq.s32.totalorder %s10, 1
    %p49 = scmp.ne.s32.totalorder %s44, %s46
    %p50 = scmp.eq.s32.totalorder %s10, 0
    %p51 = por %p49, %p50
    %p52 = scmp.ne.s32.totalorder %s44, %s46
    %p53 = scmp.eq.s32.totalorder %s15, 1
    %p54 = por %p52, %p53
    %p55 = scmp.ne.s32.totalorder %s46, %s47
    %p56 = scmp.eq.s32.totalorder %s15, 0
    %p57 = por %p55, %p56
    %p58 = scmp.ne.s32.totalorder %s46, %s47
    %p59 = scmp.eq.s32.totalorder %s16, 1
    %p60 = por %p58, %p59
    %p62 = scmp.ne.s32.totalorder %s47, %s61
    %p63 = scmp.eq.s32.totalorder %s16, 0
    %p64 = por %p62, %p63
    %s66 = sadd.s32 %s65, 1
    %p69 = scmp.eq.s32.totalorder %s10, 1
    %p70 = scmp.ne.s32.totalorder %s65, %s67
    %p71 = scmp.eq.s32.totalorder %s10, 0
    %p72 = por %p70, %p71
    %p73 = scmp.ne.s32.totalorder %s65, %s67
    %p74 = scmp.eq.s32.totalorder %s15, 1
    %p75 = por %p73, %p74
    %p76 = scmp.ne.s32.totalorder %s67, %s68
    %p77 = scmp.eq.s32.totalorder %s15, 0
    %p78 = por %p76, %p77
    %p79 = scmp.ne.s32.totalorder %s67, %s68
    %p80 = scmp.eq.s32.totalorder %s16, 1
    %p81 = por %p79, %p80
    %p83 = scmp.ne.s32.totalorder %s68, %s82
    %p84 = scmp.eq.s32.totalorder %s16, 0
    %p85 = por %p83, %p84
    %s87 = sadd.s32 %s86, 1
    %p90 = scmp.eq.s32.totalorder %s10, 1
    %p91 = scmp.ne.s32.totalorder %s86, %s88
    %p92 = scmp.eq.s32.totalorder %s10, 0
    %p93 = por %p91, %p92
    %p94 = scmp.ne.s32.totalorder %s86, %s88
    %p95 = scmp.eq.s32.totalorder %s15, 1
    %p96 = por %p94, %p95
    %p97 = scmp.ne.s32.totalorder %s88, %s89
    %p98 = scmp.eq.s32.totalorder %s15, 0
    %p99 = por %p97, %p98
    %p100 = scmp.ne.s32.totalorder %s88, %s89
    %p101 = scmp.eq.s32.totalorder %s16, 1
    %p102 = por %p100, %p101
    %p104 = scmp.ne.s32.totalorder %s89, %s103
    %p105 = scmp.eq.s32.totalorder %s16, 0
    %p106 = por %p104, %p105
    %s107 = ssub.s32 %s10, %s17
    %p108 = scmp.eq.s32.totalorder %s107, 0
    %s110 = sadd.s32 %s109, 1
    %s111 = scalar_select %p108, %s109, %s110
    %p114 = pneg %p108
    %p115 = scmp.eq.s32.totalorder %s10, 1
    %p116 = por %p114, %p115
    %p117 = scmp.ne.s32.totalorder %s109, %s112
    %p118 = scmp.eq.s32.totalorder %s10, 0
    %p119 = por %p117, %p118
    %p120 = scmp.ne.s32.totalorder %s109, %s112
    %p121 = scmp.eq.s32.totalorder %s15, 1
    %p122 = por %p120, %p121
    %p123 = scmp.ne.s32.totalorder %s112, %s113
    %p124 = scmp.eq.s32.totalorder %s15, 0
    %p125 = por %p123, %p124
    %p126 = scmp.ne.s32.totalorder %s112, %s113
    %p127 = scmp.eq.s32.totalorder %s16, 1
    %p128 = por %p126, %p127
    %p130 = scmp.ne.s32.totalorder %s113, %s129
    %p131 = scmp.eq.s32.totalorder %s16, 0
    %p132 = por %p130, %p131
    %p133 = scmp.le.s32.totalorder 1, %s10
    %p134 = scmp.lt.s32.totalorder %s10, 3
    %p135 = pnand %p133, %p134
    %p136 = pneg %p135
    // Predicated region
    $region9: #{basic_conv2d.1} parent=5 // pred_check
      _
    $region10: #{basic_conv2d.1} parent=5 // pred_check_branch
      %138 = sbr.rel (%p135) target = $region12
    $region11: #{basic_conv2d.1} parent=5 // pred_region
      %s139 = ssub.s32 %s10, 1
      // Predicated region
      $region13: #{basic_conv2d.1} parent=11 // pred_check
        %p140 = pneg %p57
      $region14: #{basic_conv2d.1} parent=11 // pred_check_branch
        %142 = sbr.rel (%p140) target = $region16
      $region15: #{basic_conv2d.1} parent=11 // pred_region
        _
      $region16: #{basic_conv2d.1} parent=11 // pred_fallthru
        _
      // Predicated region
      $region17: #{basic_conv2d.1} parent=11 // pred_check
        %p143 = pneg %p78
      $region18: #{basic_conv2d.1} parent=11 // pred_check_branch
        %145 = sbr.rel (%p143) target = $region20
      $region19: #{basic_conv2d.1} parent=11 // pred_region
        _
      $region20: #{basic_conv2d.1} parent=11 // pred_fallthru
        _
      // Predicated region
      $region21: #{basic_conv2d.1} parent=11 // pred_check
        %p146 = pneg %p99
      $region22: #{basic_conv2d.1} parent=11 // pred_check_branch
        %148 = sbr.rel (%p146) target = $region24
      $region23: #{basic_conv2d.1} parent=11 // pred_region
        _
      $region24: #{basic_conv2d.1} parent=11 // pred_fallthru
        _
    $region12: #{basic_conv2d.1} parent=5 // pred_fallthru
      _
    %p149 = scmp.lt.s32.totalorder %s10, 2
    // Predicated region
    $region25: #{basic_conv2d.1} parent=5 // pred_check
      %p150 = pneg %p149
    $region26: #{basic_conv2d.1} parent=5 // pred_check_branch
      %152 = sbr.rel (%p150) target = $region28
    $region27: #{basic_conv2d.1} parent=5 // pred_region
      // Predicated region
      $region29: #{basic_conv2d.1} parent=27 // pred_check
        %p153 = pneg %p30
      $region30: #{basic_conv2d.1} parent=27 // pred_check_branch
        %155 = sbr.rel (%p153) target = $region32
      $region31: #{basic_conv2d.1} parent=27 // pred_region
        %p156 = scmp.lt.s32.totalorder %s10, 1
        %s157 = scalar_select %p156, %s10, 1
        %s158 = smul.addr %s157, 43
        %s159 = smul.addr %s158, 4
        %s160 = scalar_lea.vmem %s0, %s159
      $region32: #{basic_conv2d.1} parent=27 // pred_fallthru
        _
    $region28: #{basic_conv2d.1} parent=5 // pred_fallthru
      _
    %p161 = scmp.le.s32.totalorder 1, %s10
    %p162 = scmp.lt.s32.totalorder %s10, 3
    %p163 = pnand %p161, %p162
    %p164 = pneg %p163
    // Predicated region
    $region33: #{basic_conv2d.1} parent=5 // pred_check
      _
    $region34: #{basic_conv2d.1} parent=5 // pred_check_branch
      %166 = sbr.rel (%p163) target = $region36
    $region35: #{basic_conv2d.1} parent=5 // pred_region
      %s167 = ssub.s32 %s10, 1
      %p168 = scmp.lt.s32.totalorder %s15, 1
      %s169 = scalar_select %p168, %s15, 1
      %s170 = smul.addr %s169, 43
      %s171 = smul.addr %s170, 4
      %s172 = scalar_lea.vmem %s0, %s171
      %p173 = pneg %p36
      %p174 = pneg %p33
      %p175 = pneg %p57
      %p176 = pneg %p54
      %p177 = pneg %p78
      %p178 = pneg %p75
      %p179 = pneg %p99
      %p180 = pneg %p96
      %p181 = pneg %p125
      %p182 = pneg %p122
      %p183 = scmp.lt.s32.totalorder %s15, 1
      %s184 = scalar_select %p183, %s15, 1
      %s185 = smul.addr %s184, 36
      %s186 = smul.addr %s185, 4
      %s187 = scalar_lea.vmem %s4, %s186
      %p188 = scmp.lt.s32.totalorder %s15, 1
      %s189 = scalar_select %p188, %s15, 1
      %s190 = smul.addr %s189, 43
      %s191 = smul.addr %s190, 4
      %s192 = scalar_lea.vmem %s0, %s191
      %p193 = scmp.lt.s32.totalorder %s15, 1
      %s194 = scalar_select %p193, %s15, 1
      %s195 = smul.addr %s194, 36
      %s196 = smul.addr %s195, 4
      %s197 = scalar_lea.vmem %s4, %s196
      %v199 = vld [vmem:[%s192] sm:$0xf]
      %v200 = vld [vmem:[%s192 + $0x4] sm:$0xf]
      %v201 = vld [vmem:[%s192 + $0x8] sm:$0xf]
      %v202 = vld [vmem:[%s192 + $0xc] sm:$0xf]
      %v203 = vld [vmem:[%s192 + $0x10] sm:$0xf]
      %v204 = vld [vmem:[%s192 + $0x14] sm:$0xf]
      %v205 = vld [vmem:[%s192 + $0x18] sm:$0xf]
      %v206 = vld [vmem:[%s192 + $0x1c] sm:$0xf]
      %v207 = vld [vmem:[%s192 + $0x20] sm:$0xf]
      %v208 = vld [vmem:[%s192 + $0x24] sm:$0xf]
      %v209 = vld [vmem:[%s192 + $0x28] sm:$0xf]
      %v210 = vld [vmem:[%s192 + $0x2c] sm:$0xf]
      %v211 = vld [vmem:[%s192 + $0x30] sm:$0xf]
      %v212 = vld [vmem:[%s192 + $0x34] sm:$0xf]
      %v213 = vld [vmem:[%s192 + $0x38] sm:$0xf]
      %v214 = vld [vmem:[%s192 + $0x3c] sm:$0xf]
      %v215 = vld [vmem:[%s192 + $0x40] sm:$0xf]
      %v216 = vld [vmem:[%s192 + $0x44] sm:$0xf]
      %v217 = vld [vmem:[%s192 + $0x48] sm:$0xf]
      %v218 = vld [vmem:[%s192 + $0x4c] sm:$0xf]
      %v219 = vld [vmem:[%s192 + $0x50] sm:$0xf]
      %v220 = vld [vmem:[%s192 + $0x54] sm:$0xf]
      %v221 = vld [vmem:[%s192 + $0x58] sm:$0xf]
      %v222 = vld [vmem:[%s192 + $0x5c] sm:$0xf]
      %v223 = vld [vmem:[%s192 + $0x60] sm:$0xf]
      %v224 = vld [vmem:[%s192 + $0x64] sm:$0xf]
      %v225 = vld [vmem:[%s192 + $0x68] sm:$0xf]
      %v226 = vld [vmem:[%s192 + $0x6c] sm:$0xf]
      %v227 = vld [vmem:[%s192 + $0x70] sm:$0xf]
      %v228 = vld [vmem:[%s192 + $0x74] sm:$0xf]
      %v229 = vld [vmem:[%s192 + $0x78] sm:$0xf]
      %v230 = vld [vmem:[%s192 + $0x7c] sm:$0xf]
      %v231 = vld [vmem:[%s192 + $0x80] sm:$0xf]
      %v232 = vld [vmem:[%s192 + $0x84] sm:$0xf]
      %v233 = vld [vmem:[%s192 + $0x88] sm:$0xf]
      %v234 = vld [vmem:[%s192 + $0x8c] sm:$0xf]
      %v235 = vld [vmem:[%s1] sm:$0x3]
      %v236 = vld [vmem:[%s192 + $0x90] sm:$0x1]
      %s237 = scalar_lea.vmem %s1, 2
      %v238 = vld [vmem:[%s237] sm:$0x3]
      %v276 = vunpack.c.l.b16 %v199
      %v277 = vunpack.c.l.b16 %v200
      %v278 = vunpack.c.l.b16 %v201
      %v279 = vunpack.c.l.b16 %v202
      %v280 = vunpack.c.l.b16 %v203
      %v281 = vunpack.c.l.b16 %v204
      %v282 = vunpack.c.l.b16 %v205
      %v283 = vunpack.c.l.b16 %v206
      %v284 = vunpack.c.l.b16 %v207
      %v285 = vunpack.c.l.b16 %v208
      %v286 = vunpack.c.l.b16 %v209
      %v287 = vunpack.c.l.b16 %v210
      %v288 = vunpack.c.l.b16 %v211
      %v289 = vunpack.c.l.b16 %v212
      %v290 = vunpack.c.l.b16 %v213
      %v291 = vunpack.c.l.b16 %v214
      %v292 = vunpack.c.l.b16 %v215
      %v293 = vunpack.c.l.b16 %v216
      %v294 = vunpack.c.l.b16 %v217
      %v295 = vunpack.c.l.b16 %v218
      %v296 = vunpack.c.l.b16 %v219
      %v297 = vunpack.c.l.b16 %v220
      %v298 = vunpack.c.l.b16 %v221
      %v299 = vunpack.c.l.b16 %v222
      %v300 = vunpack.c.l.b16 %v223
      %v301 = vunpack.c.l.b16 %v224
      %v302 = vunpack.c.l.b16 %v225
      %v303 = vunpack.c.l.b16 %v226
      %v304 = vunpack.c.l.b16 %v227
      %v305 = vunpack.c.l.b16 %v228
      %v306 = vunpack.c.l.b16 %v229
      %v307 = vunpack.c.l.b16 %v230
      %v308 = vunpack.c.l.b16 %v231
      %v309 = vunpack.c.l.b16 %v232
      %v310 = vunpack.c.l.b16 %v233
      %v311 = vunpack.c.l.b16 %v234
      %v312 = vunpack.c.l.b16 %v236
      %v313 = vpack.c.b16 %v277, %v276
      %v314 = vpack.c.b16 %v279, %v278
      %v315 = vpack.c.b16 %v281, %v280
      %v316 = vpack.c.b16 %v283, %v282
      %v317 = vpack.c.b16 %v285, %v284
      %v318 = vpack.c.b16 %v287, %v286
      %v319 = vpack.c.b16 %v289, %v288
      %v320 = vpack.c.b16 %v291, %v290
      %v321 = vpack.c.b16 %v293, %v292
      %v322 = vpack.c.b16 %v295, %v294
      %v323 = vpack.c.b16 %v297, %v296
      %v324 = vpack.c.b16 %v299, %v298
      %v325 = vpack.c.b16 %v301, %v300
      %v326 = vpack.c.b16 %v303, %v302
      %v327 = vpack.c.b16 %v305, %v304
      %v328 = vpack.c.b16 %v307, %v306
      %v329 = vpack.c.b16 %v309, %v308
      %v330 = vpack.c.b16 %v311, %v310
      %v331 = vpack.c.b16 %v312, %v312
      %vm332 = vsmask.f32 7424
      %v334 = vshrl.u32 %v313, 16
      %v336 = vshll.u32 %v313, 16
      %v338 = vrot.slane %v336, 1
      %v339 = vor.u32 %v334, %v338
      %v341 = vshll.u32 %v314, 16
      %v343 = vrot.slane %v341, 1
      %v344 = vsel %vm332, %v339, %v343
      %v345 = vshrl.u32 %v314, 16
      %v347 = vor.u32 %v345, %v343
      %v349 = vshll.u32 %v315, 16
      %v351 = vrot.slane %v349, 1
      %v352 = vsel %vm332, %v347, %v351
      %v353 = vshrl.u32 %v315, 16
      %v355 = vor.u32 %v353, %v351
      %v357 = vshll.u32 %v316, 16
      %v359 = vrot.slane %v357, 1
      %v360 = vsel %vm332, %v355, %v359
      %v361 = vshrl.u32 %v316, 16
      %v363 = vor.u32 %v361, %v359
      %v365 = vshll.u32 %v317, 16
      %v367 = vrot.slane %v365, 1
      %v368 = vsel %vm332, %v363, %v367
      %v369 = vshrl.u32 %v317, 16
      %v371 = vor.u32 %v369, %v367
      %v373 = vshll.u32 %v318, 16
      %v375 = vrot.slane %v373, 1
      %v376 = vsel %vm332, %v371, %v375
      %v377 = vshrl.u32 %v318, 16
      %v379 = vor.u32 %v377, %v375
      %v381 = vshll.u32 %v319, 16
      %v383 = vrot.slane %v381, 1
      %v384 = vsel %vm332, %v379, %v383
      %v385 = vshrl.u32 %v319, 16
      %v387 = vor.u32 %v385, %v383
      %v389 = vshll.u32 %v320, 16
      %v391 = vrot.slane %v389, 1
      %v392 = vsel %vm332, %v387, %v391
      %v393 = vshrl.u32 %v320, 16
      %v395 = vor.u32 %v393, %v391
      %v397 = vshll.u32 %v321, 16
      %v399 = vrot.slane %v397, 1
      %v400 = vsel %vm332, %v395, %v399
      %v401 = vshrl.u32 %v321, 16
      %v403 = vor.u32 %v401, %v399
      %v405 = vshll.u32 %v322, 16
      %v407 = vrot.slane %v405, 1
      %v408 = vsel %vm332, %v403, %v407
      %v409 = vshrl.u32 %v322, 16
      %v411 = vor.u32 %v409, %v407
      %v413 = vshll.u32 %v323, 16
      %v415 = vrot.slane %v413, 1
      %v416 = vsel %vm332, %v411, %v415
      %v417 = vshrl.u32 %v323, 16
      %v419 = vor.u32 %v417, %v415
      %v421 = vshll.u32 %v324, 16
      %v423 = vrot.slane %v421, 1
      %v424 = vsel %vm332, %v419, %v423
      %v425 = vshrl.u32 %v324, 16
      %v427 = vor.u32 %v425, %v423
      %v429 = vshll.u32 %v325, 16
      %v431 = vrot.slane %v429, 1
      %v432 = vsel %vm332, %v427, %v431
      %v433 = vshrl.u32 %v325, 16
      %v435 = vor.u32 %v433, %v431
      %v437 = vshll.u32 %v326, 16
      %v439 = vrot.slane %v437, 1
      %v440 = vsel %vm332, %v435, %v439
      %v441 = vshrl.u32 %v326, 16
      %v443 = vor.u32 %v441, %v439
      %v445 = vshll.u32 %v327, 16
      %v447 = vrot.slane %v445, 1
      %v448 = vsel %vm332, %v443, %v447
      %v449 = vshrl.u32 %v327, 16
      %v451 = vor.u32 %v449, %v447
      %v453 = vshll.u32 %v328, 16
      %v455 = vrot.slane %v453, 1
      %v456 = vsel %vm332, %v451, %v455
      %v457 = vshrl.u32 %v328, 16
      %v459 = vor.u32 %v457, %v455
      %v461 = vshll.u32 %v329, 16
      %v463 = vrot.slane %v461, 1
      %v464 = vsel %vm332, %v459, %v463
      %v465 = vshrl.u32 %v329, 16
      %v467 = vor.u32 %v465, %v463
      %v469 = vshll.u32 %v330, 16
      %v471 = vrot.slane %v469, 1
      %v472 = vsel %vm332, %v467, %v471
      %v473 = vshrl.u32 %v330, 16
      %v475 = vor.u32 %v473, %v471
      %v477 = vshll.u32 %v331, 16
      %v479 = vrot.slane %v477, 1
      %v480 = vsel %vm332, %v475, %v479
      %vm481 = vcmask 31744
      %v483 = vsel %vm481, %v344, 0
      %v486 = vsel %vm481, %v352, 0
      %v489 = vsel %vm481, %v360, 0
      %v492 = vsel %vm481, %v368, 0
      %v495 = vsel %vm481, %v376, 0
      %v498 = vsel %vm481, %v384, 0
      %v501 = vsel %vm481, %v392, 0
      %v504 = vsel %vm481, %v400, 0
      %v507 = vsel %vm481, %v408, 0
      %v510 = vsel %vm481, %v416, 0
      %v513 = vsel %vm481, %v424, 0
      %v516 = vsel %vm481, %v432, 0
      %v519 = vsel %vm481, %v440, 0
      %v522 = vsel %vm481, %v448, 0
      %v525 = vsel %vm481, %v456, 0
      %v528 = vsel %vm481, %v464, 0
      %v531 = vsel %vm481, %v472, 0
      %v534 = vsel %vm481, %v480, 0
      %vm536 = vcmask 1041408
      %v538 = vsel %vm536, %v238, 0
      %540 = vmatpush.bf16.msra.mxu0 0
      %541 = vmatpush.bf16.msra.mxu0 0
      %542 = vmatpush.bf16.msra.mxu0 0
      %543 = vmatpush.bf16.msra.mxu0 0
      %544 = vmatpush.bf16.msra.mxu0 0
      %545 = vmatpush.bf16.msra.mxu0 0
      %546 = vmatpush.bf16.msra.mxu0 0
      %547 = vmatpush.bf16.msra.mxu0 %v538
      %548 = vmatmul.bf16.gmra.mxu0 %v483
      %v549 = vpop.f32.mrf.mxu0
      %v550 = vadd.f32 0.0, %v549
      %v551 = vpop.f32.mrf.mxu0
      %v552 = vadd.f32 0.0, %v551
      %553 = vmatmul.bf16.gmra.mxu0 %v486
      %v554 = vpop.f32.mrf.mxu0
      %v555 = vadd.f32 0.0, %v554
      %v556 = vpop.f32.mrf.mxu0
      %v557 = vadd.f32 0.0, %v556
      %558 = vmatmul.bf16.gmra.mxu0 %v489
      %v559 = vpop.f32.mrf.mxu0
      %v560 = vadd.f32 0.0, %v559
      %v561 = vpop.f32.mrf.mxu0
      %v562 = vadd.f32 0.0, %v561
      %563 = vmatmul.bf16.gmra.mxu0 %v492
      %v564 = vpop.f32.mrf.mxu0
      %v565 = vadd.f32 0.0, %v564
      %v566 = vpop.f32.mrf.mxu0
      %v567 = vadd.f32 0.0, %v566
      %568 = vmatmul.bf16.gmra.mxu0 %v495
      %v569 = vpop.f32.mrf.mxu0
      %v570 = vadd.f32 0.0, %v569
      %v571 = vpop.f32.mrf.mxu0
      %v572 = vadd.f32 0.0, %v571
      %573 = vmatmul.bf16.gmra.mxu0 %v498
      %v574 = vpop.f32.mrf.mxu0
      %v575 = vadd.f32 0.0, %v574
      %v576 = vpop.f32.mrf.mxu0
      %v577 = vadd.f32 0.0, %v576
      %578 = vmatmul.bf16.gmra.mxu0 %v501
      %v579 = vpop.f32.mrf.mxu0
      %v580 = vadd.f32 0.0, %v579
      %v581 = vpop.f32.mrf.mxu0
      %v582 = vadd.f32 0.0, %v581
      %583 = vmatmul.bf16.gmra.mxu0 %v504
      %v584 = vpop.f32.mrf.mxu0
      %v585 = vadd.f32 0.0, %v584
      %v586 = vpop.f32.mrf.mxu0
      %v587 = vadd.f32 0.0, %v586
      %588 = vmatmul.bf16.gmra.mxu0 %v507
      %v589 = vpop.f32.mrf.mxu0
      %v590 = vadd.f32 0.0, %v589
      %v591 = vpop.f32.mrf.mxu0
      %v592 = vadd.f32 0.0, %v591
      %593 = vmatmul.bf16.gmra.mxu0 %v510
      %v594 = vpop.f32.mrf.mxu0
      %v595 = vadd.f32 0.0, %v594
      %v596 = vpop.f32.mrf.mxu0
      %v597 = vadd.f32 0.0, %v596
      %598 = vmatmul.bf16.gmra.mxu0 %v513
      %v599 = vpop.f32.mrf.mxu0
      %v600 = vadd.f32 0.0, %v599
      %v601 = vpop.f32.mrf.mxu0
      %v602 = vadd.f32 0.0, %v601
      %603 = vmatmul.bf16.gmra.mxu0 %v516
      %v604 = vpop.f32.mrf.mxu0
      %v605 = vadd.f32 0.0, %v604
      %v606 = vpop.f32.mrf.mxu0
      %v607 = vadd.f32 0.0, %v606
      %608 = vmatmul.bf16.gmra.mxu0 %v519
      %v609 = vpop.f32.mrf.mxu0
      %v610 = vadd.f32 0.0, %v609
      %v611 = vpop.f32.mrf.mxu0
      %v612 = vadd.f32 0.0, %v611
      %613 = vmatmul.bf16.gmra.mxu0 %v522
      %v614 = vpop.f32.mrf.mxu0
      %v615 = vadd.f32 0.0, %v614
      %v616 = vpop.f32.mrf.mxu0
      %v617 = vadd.f32 0.0, %v616
      %618 = vmatmul.bf16.gmra.mxu0 %v525
      %v619 = vpop.f32.mrf.mxu0
      %v620 = vadd.f32 0.0, %v619
      %v621 = vpop.f32.mrf.mxu0
      %v622 = vadd.f32 0.0, %v621
      %623 = vmatmul.bf16.gmra.mxu0 %v528
      %v624 = vpop.f32.mrf.mxu0
      %v625 = vadd.f32 0.0, %v624
      %v626 = vpop.f32.mrf.mxu0
      %v627 = vadd.f32 0.0, %v626
      %628 = vmatmul.bf16.gmra.mxu0 %v531
      %v629 = vpop.f32.mrf.mxu0
      %v630 = vadd.f32 0.0, %v629
      %v631 = vpop.f32.mrf.mxu0
      %v632 = vadd.f32 0.0, %v631
      %633 = vmatmul.bf16.gmra.mxu0 %v534
      %v634 = vpop.f32.mrf.mxu0
      %v635 = vadd.f32 0.0, %v634
      %v636 = vpop.f32.mrf.mxu0
      %v637 = vadd.f32 0.0, %v636
      %638 = vdwg.mxu0
      %v639 = vsel %vm481, %v313, 0
      %v641 = vsel %vm481, %v314, 0
      %v643 = vsel %vm481, %v315, 0
      %v645 = vsel %vm481, %v316, 0
      %v647 = vsel %vm481, %v317, 0
      %v649 = vsel %vm481, %v318, 0
      %v651 = vsel %vm481, %v319, 0
      %v653 = vsel %vm481, %v320, 0
      %v655 = vsel %vm481, %v321, 0
      %v657 = vsel %vm481, %v322, 0
      %v659 = vsel %vm481, %v323, 0
      %v661 = vsel %vm481, %v324, 0
      %v663 = vsel %vm481, %v325, 0
      %v665 = vsel %vm481, %v326, 0
      %v667 = vsel %vm481, %v327, 0
      %v669 = vsel %vm481, %v328, 0
      %v671 = vsel %vm481, %v329, 0
      %v673 = vsel %vm481, %v330, 0
      %v676 = vsel %vm536, %v235, 0
      %678 = vmatpush.bf16.msra.mxu0 0
      %679 = vmatpush.bf16.msra.mxu0 0
      %680 = vmatpush.bf16.msra.mxu0 0
      %681 = vmatpush.bf16.msra.mxu0 0
      %682 = vmatpush.bf16.msra.mxu0 0
      %683 = vmatpush.bf16.msra.mxu0 0
      %684 = vmatpush.bf16.msra.mxu0 0
      %685 = vmatpush.bf16.msra.mxu0 %v676
      %686 = vmatmul.bf16.gmra.mxu0 %v639
      %v687 = vpop.f32.mrf.mxu0
      %v688 = vadd.f32 %v550, %v687
      %v689 = vpop.f32.mrf.mxu0
      %v690 = vadd.f32 %v552, %v689
      %691 = vmatmul.bf16.gmra.mxu0 %v641
      %v692 = vpop.f32.mrf.mxu0
      %v693 = vadd.f32 %v555, %v692
      %v694 = vpop.f32.mrf.mxu0
      %v695 = vadd.f32 %v557, %v694
      %696 = vmatmul.bf16.gmra.mxu0 %v643
      %v697 = vpop.f32.mrf.mxu0
      %v698 = vadd.f32 %v560, %v697
      %v699 = vpop.f32.mrf.mxu0
      %v700 = vadd.f32 %v562, %v699
      %701 = vmatmul.bf16.gmra.mxu0 %v645
      %v702 = vpop.f32.mrf.mxu0
      %v703 = vadd.f32 %v565, %v702
      %v704 = vpop.f32.mrf.mxu0
      %v705 = vadd.f32 %v567, %v704
      %706 = vmatmul.bf16.gmra.mxu0 %v647
      %v707 = vpop.f32.mrf.mxu0
      %v708 = vadd.f32 %v570, %v707
      %v709 = vpop.f32.mrf.mxu0
      %v710 = vadd.f32 %v572, %v709
      %711 = vmatmul.bf16.gmra.mxu0 %v649
      %v712 = vpop.f32.mrf.mxu0
      %v713 = vadd.f32 %v575, %v712
      %v714 = vpop.f32.mrf.mxu0
      %v715 = vadd.f32 %v577, %v714
      %716 = vmatmul.bf16.gmra.mxu0 %v651
      %v717 = vpop.f32.mrf.mxu0
      %v718 = vadd.f32 %v580, %v717
      %v719 = vpop.f32.mrf.mxu0
      %v720 = vadd.f32 %v582, %v719
      %721 = vmatmul.bf16.gmra.mxu0 %v653
      %v722 = vpop.f32.mrf.mxu0
      %v723 = vadd.f32 %v585, %v722
      %v724 = vpop.f32.mrf.mxu0
      %v725 = vadd.f32 %v587, %v724
      %726 = vmatmul.bf16.gmra.mxu0 %v655
      %v727 = vpop.f32.mrf.mxu0
      %v728 = vadd.f32 %v590, %v727
      %v729 = vpop.f32.mrf.mxu0
      %v730 = vadd.f32 %v592, %v729
      %731 = vmatmul.bf16.gmra.mxu0 %v657
      %v732 = vpop.f32.mrf.mxu0
      %v733 = vadd.f32 %v595, %v732
      %v734 = vpop.f32.mrf.mxu0
      %v735 = vadd.f32 %v597, %v734
      %736 = vmatmul.bf16.gmra.mxu0 %v659
      %v737 = vpop.f32.mrf.mxu0
      %v738 = vadd.f32 %v600, %v737
      %v739 = vpop.f32.mrf.mxu0
      %v740 = vadd.f32 %v602, %v739
      %741 = vmatmul.bf16.gmra.mxu0 %v661
      %v742 = vpop.f32.mrf.mxu0
      %v743 = vadd.f32 %v605, %v742
      %v744 = vpop.f32.mrf.mxu0
      %v745 = vadd.f32 %v607, %v744
      %746 = vmatmul.bf16.gmra.mxu0 %v663
      %v747 = vpop.f32.mrf.mxu0
      %v748 = vadd.f32 %v610, %v747
      %v749 = vpop.f32.mrf.mxu0
      %v750 = vadd.f32 %v612, %v749
      %751 = vmatmul.bf16.gmra.mxu0 %v665
      %v752 = vpop.f32.mrf.mxu0
      %v753 = vadd.f32 %v615, %v752
      %v754 = vpop.f32.mrf.mxu0
      %v755 = vadd.f32 %v617, %v754
      %756 = vmatmul.bf16.gmra.mxu0 %v667
      %v757 = vpop.f32.mrf.mxu0
      %v758 = vadd.f32 %v620, %v757
      %v759 = vpop.f32.mrf.mxu0
      %v760 = vadd.f32 %v622, %v759
      %761 = vmatmul.bf16.gmra.mxu0 %v669
      %v762 = vpop.f32.mrf.mxu0
      %v763 = vadd.f32 %v625, %v762
      %v764 = vpop.f32.mrf.mxu0
      %v765 = vadd.f32 %v627, %v764
      %766 = vmatmul.bf16.gmra.mxu0 %v671
      %v767 = vpop.f32.mrf.mxu0
      %v768 = vadd.f32 %v630, %v767
      %v769 = vpop.f32.mrf.mxu0
      %v770 = vadd.f32 %v632, %v769
      %771 = vmatmul.bf16.gmra.mxu0 %v673
      %v772 = vpop.f32.mrf.mxu0
      %v773 = vadd.f32 %v635, %v772
      %v774 = vpop.f32.mrf.mxu0
      %v775 = vadd.f32 %v637, %v774
      %776 = vdwg.mxu0
      %v777 = vld [vmem:[%s192] sm:$0xe]
      %s778 = scalar_lea.vmem %s1, 4
      %v779 = vld [vmem:[%s778] sm:$0x3]
      %v781 = vunpack.c.l.b16 %v777
      %v782 = vpack.c.b16 %v277, %v781
      %vm783 = vcmask 1046528
      %v784 = vrot.slane %v782, 1
      %v785 = vrot.slane %v314, 1
      %v786 = vsel %vm783, %v784, %v785
      %v787 = vrot.slane %v315, 1
      %v788 = vsel %vm783, %v785, %v787
      %v789 = vrot.slane %v316, 1
      %v790 = vsel %vm783, %v787, %v789
      %v791 = vrot.slane %v317, 1
      %v792 = vsel %vm783, %v789, %v791
      %v793 = vrot.slane %v318, 1
      %v794 = vsel %vm783, %v791, %v793
      %v795 = vrot.slane %v319, 1
      %v796 = vsel %vm783, %v793, %v795
      %v797 = vrot.slane %v320, 1
      %v798 = vsel %vm783, %v795, %v797
      %v799 = vrot.slane %v321, 1
      %v800 = vsel %vm783, %v797, %v799
      %v801 = vrot.slane %v322, 1
      %v802 = vsel %vm783, %v799, %v801
      %v803 = vrot.slane %v323, 1
      %v804 = vsel %vm783, %v801, %v803
      %v805 = vrot.slane %v324, 1
      %v806 = vsel %vm783, %v803, %v805
      %v807 = vrot.slane %v325, 1
      %v808 = vsel %vm783, %v805, %v807
      %v809 = vrot.slane %v326, 1
      %v810 = vsel %vm783, %v807, %v809
      %v811 = vrot.slane %v327, 1
      %v812 = vsel %vm783, %v809, %v811
      %v813 = vrot.slane %v328, 1
      %v814 = vsel %vm783, %v811, %v813
      %v815 = vrot.slane %v329, 1
      %v816 = vsel %vm783, %v813, %v815
      %v817 = vrot.slane %v330, 1
      %v818 = vsel %vm783, %v815, %v817
      %v819 = vrot.slane %v331, 1
      %v820 = vsel %vm783, %v817, %v819
      %v822 = vsel %vm481, %v786, 0
      %v825 = vsel %vm481, %v788, 0
      %v828 = vsel %vm481, %v790, 0
      %v831 = vsel %vm481, %v792, 0
      %v834 = vsel %vm481, %v794, 0
      %v837 = vsel %vm481, %v796, 0
      %v840 = vsel %vm481, %v798, 0
      %v843 = vsel %vm481, %v800, 0
      %v846 = vsel %vm481, %v802, 0
      %v849 = vsel %vm481, %v804, 0
      %v852 = vsel %vm481, %v806, 0
      %v855 = vsel %vm481, %v808, 0
      %v858 = vsel %vm481, %v810, 0
      %v861 = vsel %vm481, %v812, 0
      %v864 = vsel %vm481, %v814, 0
      %v867 = vsel %vm481, %v816, 0
      %v870 = vsel %vm481, %v818, 0
      %v873 = vsel %vm481, %v820, 0
      %v876 = vsel %vm536, %v779, 0
      %878 = vmatpush.bf16.msra.mxu0 0
      %879 = vmatpush.bf16.msra.mxu0 0
      %880 = vmatpush.bf16.msra.mxu0 0
      %881 = vmatpush.bf16.msra.mxu0 0
      %882 = vmatpush.bf16.msra.mxu0 0
      %883 = vmatpush.bf16.msra.mxu0 0
      %884 = vmatpush.bf16.msra.mxu0 0
      %885 = vmatpush.bf16.msra.mxu0 %v876
      %886 = vmatmul.bf16.gmra.mxu0 %v822
      %v887 = vpop.f32.mrf.mxu0
      %v888 = vadd.f32 0.0, %v887
      %v889 = vpop.f32.mrf.mxu0
      %v890 = vadd.f32 0.0, %v889
      %891 = vmatmul.bf16.gmra.mxu0 %v825
      %v892 = vpop.f32.mrf.mxu0
      %v893 = vadd.f32 0.0, %v892
      %v894 = vpop.f32.mrf.mxu0
      %v895 = vadd.f32 0.0, %v894
      %896 = vmatmul.bf16.gmra.mxu0 %v828
      %v897 = vpop.f32.mrf.mxu0
      %v898 = vadd.f32 0.0, %v897
      %v899 = vpop.f32.mrf.mxu0
      %v900 = vadd.f32 0.0, %v899
      %901 = vmatmul.bf16.gmra.mxu0 %v831
      %v902 = vpop.f32.mrf.mxu0
      %v903 = vadd.f32 0.0, %v902
      %v904 = vpop.f32.mrf.mxu0
      %v905 = vadd.f32 0.0, %v904
      %906 = vmatmul.bf16.gmra.mxu0 %v834
      %v907 = vpop.f32.mrf.mxu0
      %v908 = vadd.f32 0.0, %v907
      %v909 = vpop.f32.mrf.mxu0
      %v910 = vadd.f32 0.0, %v909
      %911 = vmatmul.bf16.gmra.mxu0 %v837
      %v912 = vpop.f32.mrf.mxu0
      %v913 = vadd.f32 0.0, %v912
      %v914 = vpop.f32.mrf.mxu0
      %v915 = vadd.f32 0.0, %v914
      %916 = vmatmul.bf16.gmra.mxu0 %v840
      %v917 = vpop.f32.mrf.mxu0
      %v918 = vadd.f32 0.0, %v917
      %v919 = vpop.f32.mrf.mxu0
      %v920 = vadd.f32 0.0, %v919
      %921 = vmatmul.bf16.gmra.mxu0 %v843
      %v922 = vpop.f32.mrf.mxu0
      %v923 = vadd.f32 0.0, %v922
      %v924 = vpop.f32.mrf.mxu0
      %v925 = vadd.f32 0.0, %v924
      %926 = vmatmul.bf16.gmra.mxu0 %v846
      %v927 = vpop.f32.mrf.mxu0
      %v928 = vadd.f32 0.0, %v927
      %v929 = vpop.f32.mrf.mxu0
      %v930 = vadd.f32 0.0, %v929
      %931 = vmatmul.bf16.gmra.mxu0 %v849
      %v932 = vpop.f32.mrf.mxu0
      %v933 = vadd.f32 0.0, %v932
      %v934 = vpop.f32.mrf.mxu0
      %v935 = vadd.f32 0.0, %v934
      %936 = vmatmul.bf16.gmra.mxu0 %v852
      %v937 = vpop.f32.mrf.mxu0
      %v938 = vadd.f32 0.0, %v937
      %v939 = vpop.f32.mrf.mxu0
      %v940 = vadd.f32 0.0, %v939
      %941 = vmatmul.bf16.gmra.mxu0 %v855
      %v942 = vpop.f32.mrf.mxu0
      %v943 = vadd.f32 0.0, %v942
      %v944 = vpop.f32.mrf.mxu0
      %v945 = vadd.f32 0.0, %v944
      %946 = vmatmul.bf16.gmra.mxu0 %v858
      %v947 = vpop.f32.mrf.mxu0
      %v948 = vadd.f32 0.0, %v947
      %v949 = vpop.f32.mrf.mxu0
      %v950 = vadd.f32 0.0, %v949
      %951 = vmatmul.bf16.gmra.mxu0 %v861
      %v952 = vpop.f32.mrf.mxu0
      %v953 = vadd.f32 0.0, %v952
      %v954 = vpop.f32.mrf.mxu0
      %v955 = vadd.f32 0.0, %v954
      %956 = vmatmul.bf16.gmra.mxu0 %v864
      %v957 = vpop.f32.mrf.mxu0
      %v958 = vadd.f32 0.0, %v957
      %v959 = vpop.f32.mrf.mxu0
      %v960 = vadd.f32 0.0, %v959
      %961 = vmatmul.bf16.gmra.mxu0 %v867
      %v962 = vpop.f32.mrf.mxu0
      %v963 = vadd.f32 0.0, %v962
      %v964 = vpop.f32.mrf.mxu0
      %v965 = vadd.f32 0.0, %v964
      %966 = vmatmul.bf16.gmra.mxu0 %v870
      %v967 = vpop.f32.mrf.mxu0
      %v968 = vadd.f32 0.0, %v967
      %v969 = vpop.f32.mrf.mxu0
      %v970 = vadd.f32 0.0, %v969
      %971 = vmatmul.bf16.gmra.mxu0 %v873
      %v972 = vpop.f32.mrf.mxu0
      %v973 = vadd.f32 0.0, %v972
      %v974 = vpop.f32.mrf.mxu0
      %v975 = vadd.f32 0.0, %v974
      %976 = vdwg.mxu0
      %v977 = vadd.f32 %v688, %v888
      %v978 = vadd.f32 %v690, %v890
      %v979 = vadd.f32 %v693, %v893
      %v980 = vadd.f32 %v695, %v895
      %v981 = vadd.f32 %v698, %v898
      %v982 = vadd.f32 %v700, %v900
      %v983 = vadd.f32 %v703, %v903
      %v984 = vadd.f32 %v705, %v905
      %v985 = vadd.f32 %v708, %v908
      %v986 = vadd.f32 %v710, %v910
      %v987 = vadd.f32 %v713, %v913
      %v988 = vadd.f32 %v715, %v915
      %v989 = vadd.f32 %v718, %v918
      %v990 = vadd.f32 %v720, %v920
      %v991 = vadd.f32 %v723, %v923
      %v992 = vadd.f32 %v725, %v925
      %v993 = vadd.f32 %v728, %v928
      %v994 = vadd.f32 %v730, %v930
      %v995 = vadd.f32 %v733, %v933
      %v996 = vadd.f32 %v735, %v935
      %v997 = vadd.f32 %v738, %v938
      %v998 = vadd.f32 %v740, %v940
      %v999 = vadd.f32 %v743, %v943
      %v1000 = vadd.f32 %v745, %v945
      %v1001 = vadd.f32 %v748, %v948
      %v1002 = vadd.f32 %v750, %v950
      %v1003 = vadd.f32 %v753, %v953
      %v1004 = vadd.f32 %v755, %v955
      %v1005 = vadd.f32 %v758, %v958
      %v1006 = vadd.f32 %v760, %v960
      %v1007 = vadd.f32 %v763, %v963
      %v1008 = vadd.f32 %v765, %v965
      %v1009 = vadd.f32 %v768, %v968
      %v1010 = vadd.f32 %v770, %v970
      %v1011 = vadd.f32 %v773, %v973
      %v1012 = vadd.f32 %v775, %v975
      %v1013 = vld [vmem:[%s192 + $0x8] sm:$0xe]
      %v1014 = vld [vmem:[%s192 + $0xc] sm:$0xf]
      %v1015 = vld [vmem:[%s192 + $0x10] sm:$0xf]
      %v1016 = vld [vmem:[%s192 + $0x14] sm:$0xf]
      %v1017 = vld [vmem:[%s192 + $0x18] sm:$0xf]
      %v1018 = vld [vmem:[%s192 + $0x1c] sm:$0xf]
      %v1019 = vld [vmem:[%s192 + $0x20] sm:$0xf]
      %v1020 = vld [vmem:[%s192 + $0x24] sm:$0xf]
      %v1021 = vld [vmem:[%s192 + $0x28] sm:$0xf]
      %v1022 = vld [vmem:[%s192 + $0x2c] sm:$0xf]
      %v1023 = vld [vmem:[%s192 + $0x30] sm:$0xf]
      %v1024 = vld [vmem:[%s192 + $0x34] sm:$0xf]
      %v1025 = vld [vmem:[%s192 + $0x38] sm:$0xf]
      %v1026 = vld [vmem:[%s192 + $0x3c] sm:$0xf]
      %v1027 = vld [vmem:[%s192 + $0x40] sm:$0xf]
      %v1028 = vld [vmem:[%s192 + $0x44] sm:$0xf]
      %v1029 = vld [vmem:[%s192 + $0x48] sm:$0xf]
      %v1030 = vld [vmem:[%s192 + $0x4c] sm:$0xf]
      %v1031 = vld [vmem:[%s192 + $0x50] sm:$0xf]
      %v1032 = vld [vmem:[%s192 + $0x54] sm:$0xf]
      %v1033 = vld [vmem:[%s192 + $0x58] sm:$0xf]
      %v1034 = vld [vmem:[%s192 + $0x5c] sm:$0xf]
      %v1035 = vld [vmem:[%s192 + $0x60] sm:$0xf]
      %v1036 = vld [vmem:[%s192 + $0x64] sm:$0xf]
      %v1037 = vld [vmem:[%s192 + $0x68] sm:$0xf]
      %v1038 = vld [vmem:[%s192 + $0x6c] sm:$0xf]
      %v1039 = vld [vmem:[%s192 + $0x70] sm:$0xf]
      %v1040 = vld [vmem:[%s192 + $0x74] sm:$0xf]
      %v1041 = vld [vmem:[%s192 + $0x78] sm:$0xf]
      %v1042 = vld [vmem:[%s192 + $0x7c] sm:$0xf]
      %v1043 = vld [vmem:[%s192 + $0x80] sm:$0xf]
      %v1044 = vld [vmem:[%s192 + $0x84] sm:$0xf]
      %v1045 = vld [vmem:[%s192 + $0x88] sm:$0xf]
      %v1046 = vld [vmem:[%s192 + $0x8c] sm:$0xf]
      %v1047 = vld [vmem:[%s192 + $0x90] sm:$0xf]
      %v1048 = vld [vmem:[%s192 + $0x94] sm:$0xf]
      %v1049 = vld [vmem:[%s192 + $0x98] sm:$0x1]
      %s1050 = scalar_lea.vmem %s1, 6
      %v1051 = vld [vmem:[%s1050] sm:$0x3]
      %v1089 = vunpack.c.l.b16 %v1013
      %v1090 = vunpack.c.l.b16 %v1014
      %v1091 = vunpack.c.l.b16 %v1015
      %v1092 = vunpack.c.l.b16 %v1016
      %v1093 = vunpack.c.l.b16 %v1017
      %v1094 = vunpack.c.l.b16 %v1018
      %v1095 = vunpack.c.l.b16 %v1019
      %v1096 = vunpack.c.l.b16 %v1020
      %v1097 = vunpack.c.l.b16 %v1021
      %v1098 = vunpack.c.l.b16 %v1022
      %v1099 = vunpack.c.l.b16 %v1023
      %v1100 = vunpack.c.l.b16 %v1024
      %v1101 = vunpack.c.l.b16 %v1025
      %v1102 = vunpack.c.l.b16 %v1026
      %v1103 = vunpack.c.l.b16 %v1027
      %v1104 = vunpack.c.l.b16 %v1028
      %v1105 = vunpack.c.l.b16 %v1029
      %v1106 = vunpack.c.l.b16 %v1030
      %v1107 = vunpack.c.l.b16 %v1031
      %v1108 = vunpack.c.l.b16 %v1032
      %v1109 = vunpack.c.l.b16 %v1033
      %v1110 = vunpack.c.l.b16 %v1034
      %v1111 = vunpack.c.l.b16 %v1035
      %v1112 = vunpack.c.l.b16 %v1036
      %v1113 = vunpack.c.l.b16 %v1037
      %v1114 = vunpack.c.l.b16 %v1038
      %v1115 = vunpack.c.l.b16 %v1039
      %v1116 = vunpack.c.l.b16 %v1040
      %v1117 = vunpack.c.l.b16 %v1041
      %v1118 = vunpack.c.l.b16 %v1042
      %v1119 = vunpack.c.l.b16 %v1043
      %v1120 = vunpack.c.l.b16 %v1044
      %v1121 = vunpack.c.l.b16 %v1045
      %v1122 = vunpack.c.l.b16 %v1046
      %v1123 = vunpack.c.l.b16 %v1047
      %v1124 = vunpack.c.l.b16 %v1048
      %v1125 = vunpack.c.l.b16 %v1049
      %v1126 = vpack.c.b16 %v1090, %v1089
      %v1127 = vpack.c.b16 %v1092, %v1091
      %v1128 = vpack.c.b16 %v1094, %v1093
      %v1129 = vpack.c.b16 %v1096, %v1095
      %v1130 = vpack.c.b16 %v1098, %v1097
      %v1131 = vpack.c.b16 %v1100, %v1099
      %v1132 = vpack.c.b16 %v1102, %v1101
      %v1133 = vpack.c.b16 %v1104, %v1103
      %v1134 = vpack.c.b16 %v1106, %v1105
      %v1135 = vpack.c.b16 %v1108, %v1107
      %v1136 = vpack.c.b16 %v1110, %v1109
      %v1137 = vpack.c.b16 %v1112, %v1111
      %v1138 = vpack.c.b16 %v1114, %v1113
      %v1139 = vpack.c.b16 %v1116, %v1115
      %v1140 = vpack.c.b16 %v1118, %v1117
      %v1141 = vpack.c.b16 %v1120, %v1119
      %v1142 = vpack.c.b16 %v1122, %v1121
      %v1143 = vpack.c.b16 %v1124, %v1123
      %v1144 = vpack.c.b16 %v1125, %v1125
      %v1145 = vrot.slane %v1126, 1
      %v1146 = vrot.slane %v1127, 1
      %v1147 = vsel %vm783, %v1145, %v1146
      %v1148 = vrot.slane %v1128, 1
      %v1149 = vsel %vm783, %v1146, %v1148
      %v1150 = vrot.slane %v1129, 1
      %v1151 = vsel %vm783, %v1148, %v1150
      %v1152 = vrot.slane %v1130, 1
      %v1153 = vsel %vm783, %v1150, %v1152
      %v1154 = vrot.slane %v1131, 1
      %v1155 = vsel %vm783, %v1152, %v1154
      %v1156 = vrot.slane %v1132, 1
      %v1157 = vsel %vm783, %v1154, %v1156
      %v1158 = vrot.slane %v1133, 1
      %v1159 = vsel %vm783, %v1156, %v1158
      %v1160 = vrot.slane %v1134, 1
      %v1161 = vsel %vm783, %v1158, %v1160
      %v1162 = vrot.slane %v1135, 1
      %v1163 = vsel %vm783, %v1160, %v1162
      %v1164 = vrot.slane %v1136, 1
      %v1165 = vsel %vm783, %v1162, %v1164
      %v1166 = vrot.slane %v1137, 1
      %v1167 = vsel %vm783, %v1164, %v1166
      %v1168 = vrot.slane %v1138, 1
      %v1169 = vsel %vm783, %v1166, %v1168
      %v1170 = vrot.slane %v1139, 1
      %v1171 = vsel %vm783, %v1168, %v1170
      %v1172 = vrot.slane %v1140, 1
      %v1173 = vsel %vm783, %v1170, %v1172
      %v1174 = vrot.slane %v1141, 1
      %v1175 = vsel %vm783, %v1172, %v1174
      %v1176 = vrot.slane %v1142, 1
      %v1177 = vsel %vm783, %v1174, %v1176
      %v1178 = vrot.slane %v1143, 1
      %v1179 = vsel %vm783, %v1176, %v1178
      %v1180 = vrot.slane %v1144, 1
      %v1181 = vsel %vm783, %v1178, %v1180
      %v1183 = vsel %vm481, %v1147, 0
      %v1186 = vsel %vm481, %v1149, 0
      %v1189 = vsel %vm481, %v1151, 0
      %v1192 = vsel %vm481, %v1153, 0
      %v1195 = vsel %vm481, %v1155, 0
      %v1198 = vsel %vm481, %v1157, 0
      %v1201 = vsel %vm481, %v1159, 0
      %v1204 = vsel %vm481, %v1161, 0
      %v1207 = vsel %vm481, %v1163, 0
      %v1210 = vsel %vm481, %v1165, 0
      %v1213 = vsel %vm481, %v1167, 0
      %v1216 = vsel %vm481, %v1169, 0
      %v1219 = vsel %vm481, %v1171, 0
      %v1222 = vsel %vm481, %v1173, 0
      %v1225 = vsel %vm481, %v1175, 0
      %v1228 = vsel %vm481, %v1177, 0
      %v1231 = vsel %vm481, %v1179, 0
      %v1234 = vsel %vm481, %v1181, 0
      %v1237 = vsel %vm536, %v1051, 0
      %1239 = vmatpush.bf16.msra.mxu0 0
      %1240 = vmatpush.bf16.msra.mxu0 0
      %1241 = vmatpush.bf16.msra.mxu0 0
      %1242 = vmatpush.bf16.msra.mxu0 0
      %1243 = vmatpush.bf16.msra.mxu0 0
      %1244 = vmatpush.bf16.msra.mxu0 0
      %1245 = vmatpush.bf16.msra.mxu0 0
      %1246 = vmatpush.bf16.msra.mxu0 %v1237
      %1247 = vmatmul.bf16.gmra.mxu0 %v1183
      %v1248 = vpop.f32.mrf.mxu0
      %v1249 = vadd.f32 0.0, %v1248
      %v1250 = vpop.f32.mrf.mxu0
      %v1251 = vadd.f32 0.0, %v1250
      %1252 = vmatmul.bf16.gmra.mxu0 %v1186
      %v1253 = vpop.f32.mrf.mxu0
      %v1254 = vadd.f32 0.0, %v1253
      %v1255 = vpop.f32.mrf.mxu0
      %v1256 = vadd.f32 0.0, %v1255
      %1257 = vmatmul.bf16.gmra.mxu0 %v1189
      %v1258 = vpop.f32.mrf.mxu0
      %v1259 = vadd.f32 0.0, %v1258
      %v1260 = vpop.f32.mrf.mxu0
      %v1261 = vadd.f32 0.0, %v1260
      %1262 = vmatmul.bf16.gmra.mxu0 %v1192
      %v1263 = vpop.f32.mrf.mxu0
      %v1264 = vadd.f32 0.0, %v1263
      %v1265 = vpop.f32.mrf.mxu0
      %v1266 = vadd.f32 0.0, %v1265
      %1267 = vmatmul.bf16.gmra.mxu0 %v1195
      %v1268 = vpop.f32.mrf.mxu0
      %v1269 = vadd.f32 0.0, %v1268
      %v1270 = vpop.f32.mrf.mxu0
      %v1271 = vadd.f32 0.0, %v1270
      %1272 = vmatmul.bf16.gmra.mxu0 %v1198
      %v1273 = vpop.f32.mrf.mxu0
      %v1274 = vadd.f32 0.0, %v1273
      %v1275 = vpop.f32.mrf.mxu0
      %v1276 = vadd.f32 0.0, %v1275
      %1277 = vmatmul.bf16.gmra.mxu0 %v1201
      %v1278 = vpop.f32.mrf.mxu0
      %v1279 = vadd.f32 0.0, %v1278
      %v1280 = vpop.f32.mrf.mxu0
      %v1281 = vadd.f32 0.0, %v1280
      %1282 = vmatmul.bf16.gmra.mxu0 %v1204
      %v1283 = vpop.f32.mrf.mxu0
      %v1284 = vadd.f32 0.0, %v1283
      %v1285 = vpop.f32.mrf.mxu0
      %v1286 = vadd.f32 0.0, %v1285
      %1287 = vmatmul.bf16.gmra.mxu0 %v1207
      %v1288 = vpop.f32.mrf.mxu0
      %v1289 = vadd.f32 0.0, %v1288
      %v1290 = vpop.f32.mrf.mxu0
      %v1291 = vadd.f32 0.0, %v1290
      %1292 = vmatmul.bf16.gmra.mxu0 %v1210
      %v1293 = vpop.f32.mrf.mxu0
      %v1294 = vadd.f32 0.0, %v1293
      %v1295 = vpop.f32.mrf.mxu0
      %v1296 = vadd.f32 0.0, %v1295
      %1297 = vmatmul.bf16.gmra.mxu0 %v1213
      %v1298 = vpop.f32.mrf.mxu0
      %v1299 = vadd.f32 0.0, %v1298
      %v1300 = vpop.f32.mrf.mxu0
      %v1301 = vadd.f32 0.0, %v1300
      %1302 = vmatmul.bf16.gmra.mxu0 %v1216
      %v1303 = vpop.f32.mrf.mxu0
      %v1304 = vadd.f32 0.0, %v1303
      %v1305 = vpop.f32.mrf.mxu0
      %v1306 = vadd.f32 0.0, %v1305
      %1307 = vmatmul.bf16.gmra.mxu0 %v1219
      %v1308 = vpop.f32.mrf.mxu0
      %v1309 = vadd.f32 0.0, %v1308
      %v1310 = vpop.f32.mrf.mxu0
      %v1311 = vadd.f32 0.0, %v1310
      %1312 = vmatmul.bf16.gmra.mxu0 %v1222
      %v1313 = vpop.f32.mrf.mxu0
      %v1314 = vadd.f32 0.0, %v1313
      %v1315 = vpop.f32.mrf.mxu0
      %v1316 = vadd.f32 0.0, %v1315
      %1317 = vmatmul.bf16.gmra.mxu0 %v1225
      %v1318 = vpop.f32.mrf.mxu0
      %v1319 = vadd.f32 0.0, %v1318
      %v1320 = vpop.f32.mrf.mxu0
      %v1321 = vadd.f32 0.0, %v1320
      %1322 = vmatmul.bf16.gmra.mxu0 %v1228
      %v1323 = vpop.f32.mrf.mxu0
      %v1324 = vadd.f32 0.0, %v1323
      %v1325 = vpop.f32.mrf.mxu0
      %v1326 = vadd.f32 0.0, %v1325
      %1327 = vmatmul.bf16.gmra.mxu0 %v1231
      %v1328 = vpop.f32.mrf.mxu0
      %v1329 = vadd.f32 0.0, %v1328
      %v1330 = vpop.f32.mrf.mxu0
      %v1331 = vadd.f32 0.0, %v1330
      %1332 = vmatmul.bf16.gmra.mxu0 %v1234
      %v1333 = vpop.f32.mrf.mxu0
      %v1334 = vadd.f32 0.0, %v1333
      %v1335 = vpop.f32.mrf.mxu0
      %v1336 = vadd.f32 0.0, %v1335
      %1337 = vdwg.mxu0
      %v1338 = vadd.f32 %v977, %v1249
      %v1339 = vadd.f32 %v978, %v1251
      %v1340 = vadd.f32 %v979, %v1254
      %v1341 = vadd.f32 %v980, %v1256
      %v1342 = vadd.f32 %v981, %v1259
      %v1343 = vadd.f32 %v982, %v1261
      %v1344 = vadd.f32 %v983, %v1264
      %v1345 = vadd.f32 %v984, %v1266
      %v1346 = vadd.f32 %v985, %v1269
      %v1347 = vadd.f32 %v986, %v1271
      %v1348 = vadd.f32 %v987, %v1274
      %v1349 = vadd.f32 %v988, %v1276
      %v1350 = vadd.f32 %v989, %v1279
      %v1351 = vadd.f32 %v990, %v1281
      %v1352 = vadd.f32 %v991, %v1284
      %v1353 = vadd.f32 %v992, %v1286
      %v1354 = vadd.f32 %v993, %v1289
      %v1355 = vadd.f32 %v994, %v1291
      %v1356 = vadd.f32 %v995, %v1294
      %v1357 = vadd.f32 %v996, %v1296
      %v1358 = vadd.f32 %v997, %v1299
      %v1359 = vadd.f32 %v998, %v1301
      %v1360 = vadd.f32 %v999, %v1304
      %v1361 = vadd.f32 %v1000, %v1306
      %v1362 = vadd.f32 %v1001, %v1309
      %v1363 = vadd.f32 %v1002, %v1311
      %v1364 = vadd.f32 %v1003, %v1314
      %v1365 = vadd.f32 %v1004, %v1316
      %v1366 = vadd.f32 %v1005, %v1319
      %v1367 = vadd.f32 %v1006, %v1321
      %v1368 = vadd.f32 %v1007, %v1324
      %v1369 = vadd.f32 %v1008, %v1326
      %v1370 = vadd.f32 %v1009, %v1329
      %v1371 = vadd.f32 %v1010, %v1331
      %v1372 = vadd.f32 %v1011, %v1334
      %v1373 = vadd.f32 %v1012, %v1336
      %v1374 = vld [vmem:[%s192 + $0x98] sm:$0x3]
      %s1375 = scalar_lea.vmem %s1, 8
      %v1376 = vld [vmem:[%s1375] sm:$0x3]
      %v1378 = vunpack.c.l.b16 %v1374
      %v1379 = vpack.c.b16 %v1378, %v1378
      %vm1380 = vsmask.f32 6400
      %v1382 = vshrl.u32 %v1126, 16
      %v1384 = vrot.slane %v1382, 1
      %v1385 = vshll.u32 %v1126, 16
      %v1387 = vrot.slane %v1385, 2
      %v1388 = vor.u32 %v1384, %v1387
      %v1390 = vshrl.u32 %v1127, 16
      %v1392 = vrot.slane %v1390, 1
      %v1393 = vshll.u32 %v1127, 16
      %v1395 = vrot.slane %v1393, 2
      %v1396 = vor.u32 %v1392, %v1395
      %v1397 = vsel %vm1380, %v1388, %v1396
      %v1399 = vshrl.u32 %v1128, 16
      %v1401 = vrot.slane %v1399, 1
      %v1402 = vshll.u32 %v1128, 16
      %v1404 = vrot.slane %v1402, 2
      %v1405 = vor.u32 %v1401, %v1404
      %v1406 = vsel %vm1380, %v1396, %v1405
      %v1408 = vshrl.u32 %v1129, 16
      %v1410 = vrot.slane %v1408, 1
      %v1411 = vshll.u32 %v1129, 16
      %v1413 = vrot.slane %v1411, 2
      %v1414 = vor.u32 %v1410, %v1413
      %v1415 = vsel %vm1380, %v1405, %v1414
      %v1417 = vshrl.u32 %v1130, 16
      %v1419 = vrot.slane %v1417, 1
      %v1420 = vshll.u32 %v1130, 16
      %v1422 = vrot.slane %v1420, 2
      %v1423 = vor.u32 %v1419, %v1422
      %v1424 = vsel %vm1380, %v1414, %v1423
      %v1426 = vshrl.u32 %v1131, 16
      %v1428 = vrot.slane %v1426, 1
      %v1429 = vshll.u32 %v1131, 16
      %v1431 = vrot.slane %v1429, 2
      %v1432 = vor.u32 %v1428, %v1431
      %v1433 = vsel %vm1380, %v1423, %v1432
      %v1435 = vshrl.u32 %v1132, 16
      %v1437 = vrot.slane %v1435, 1
      %v1438 = vshll.u32 %v1132, 16
      %v1440 = vrot.slane %v1438, 2
      %v1441 = vor.u32 %v1437, %v1440
      %v1442 = vsel %vm1380, %v1432, %v1441
      %v1444 = vshrl.u32 %v1133, 16
      %v1446 = vrot.slane %v1444, 1
      %v1447 = vshll.u32 %v1133, 16
      %v1449 = vrot.slane %v1447, 2
      %v1450 = vor.u32 %v1446, %v1449
      %v1451 = vsel %vm1380, %v1441, %v1450
      %v1453 = vshrl.u32 %v1134, 16
      %v1455 = vrot.slane %v1453, 1
      %v1456 = vshll.u32 %v1134, 16
      %v1458 = vrot.slane %v1456, 2
      %v1459 = vor.u32 %v1455, %v1458
      %v1460 = vsel %vm1380, %v1450, %v1459
      %v1462 = vshrl.u32 %v1135, 16
      %v1464 = vrot.slane %v1462, 1
      %v1465 = vshll.u32 %v1135, 16
      %v1467 = vrot.slane %v1465, 2
      %v1468 = vor.u32 %v1464, %v1467
      %v1469 = vsel %vm1380, %v1459, %v1468
      %v1471 = vshrl.u32 %v1136, 16
      %v1473 = vrot.slane %v1471, 1
      %v1474 = vshll.u32 %v1136, 16
      %v1476 = vrot.slane %v1474, 2
      %v1477 = vor.u32 %v1473, %v1476
      %v1478 = vsel %vm1380, %v1468, %v1477
      %v1480 = vshrl.u32 %v1137, 16
      %v1482 = vrot.slane %v1480, 1
      %v1483 = vshll.u32 %v1137, 16
      %v1485 = vrot.slane %v1483, 2
      %v1486 = vor.u32 %v1482, %v1485
      %v1487 = vsel %vm1380, %v1477, %v1486
      %v1489 = vshrl.u32 %v1138, 16
      %v1491 = vrot.slane %v1489, 1
      %v1492 = vshll.u32 %v1138, 16
      %v1494 = vrot.slane %v1492, 2
      %v1495 = vor.u32 %v1491, %v1494
      %v1496 = vsel %vm1380, %v1486, %v1495
      %v1498 = vshrl.u32 %v1139, 16
      %v1500 = vrot.slane %v1498, 1
      %v1501 = vshll.u32 %v1139, 16
      %v1503 = vrot.slane %v1501, 2
      %v1504 = vor.u32 %v1500, %v1503
      %v1505 = vsel %vm1380, %v1495, %v1504
      %v1507 = vshrl.u32 %v1140, 16
      %v1509 = vrot.slane %v1507, 1
      %v1510 = vshll.u32 %v1140, 16
      %v1512 = vrot.slane %v1510, 2
      %v1513 = vor.u32 %v1509, %v1512
      %v1514 = vsel %vm1380, %v1504, %v1513
      %v1516 = vshrl.u32 %v1141, 16
      %v1518 = vrot.slane %v1516, 1
      %v1519 = vshll.u32 %v1141, 16
      %v1521 = vrot.slane %v1519, 2
      %v1522 = vor.u32 %v1518, %v1521
      %v1523 = vsel %vm1380, %v1513, %v1522
      %v1525 = vshrl.u32 %v1142, 16
      %v1527 = vrot.slane %v1525, 1
      %v1528 = vshll.u32 %v1142, 16
      %v1530 = vrot.slane %v1528, 2
      %v1531 = vor.u32 %v1527, %v1530
      %v1532 = vsel %vm1380, %v1522, %v1531
      %v1534 = vshrl.u32 %v1143, 16
      %v1536 = vrot.slane %v1534, 1
      %v1537 = vshll.u32 %v1143, 16
      %v1539 = vrot.slane %v1537, 2
      %v1540 = vor.u32 %v1536, %v1539
      %v1541 = vsel %vm1380, %v1531, %v1540
      %v1543 = vshrl.u32 %v1379, 16
      %v1545 = vrot.slane %v1543, 1
      %v1546 = vshll.u32 %v1379, 16
      %v1548 = vrot.slane %v1546, 2
      %v1549 = vor.u32 %v1545, %v1548
      %v1550 = vsel %vm1380, %v1540, %v1549
      %v1552 = vsel %vm481, %v1397, 0
      %v1555 = vsel %vm481, %v1406, 0
      %v1558 = vsel %vm481, %v1415, 0
      %v1561 = vsel %vm481, %v1424, 0
      %v1564 = vsel %vm481, %v1433, 0
      %v1567 = vsel %vm481, %v1442, 0
      %v1570 = vsel %vm481, %v1451, 0
      %v1573 = vsel %vm481, %v1460, 0
      %v1576 = vsel %vm481, %v1469, 0
      %v1579 = vsel %vm481, %v1478, 0
      %v1582 = vsel %vm481, %v1487, 0
      %v1585 = vsel %vm481, %v1496, 0
      %v1588 = vsel %vm481, %v1505, 0
      %v1591 = vsel %vm481, %v1514, 0
      %v1594 = vsel %vm481, %v1523, 0
      %v1597 = vsel %vm481, %v1532, 0
      %v1600 = vsel %vm481, %v1541, 0
      %v1603 = vsel %vm481, %v1550, 0
      %v1606 = vsel %vm536, %v1376, 0
      %1608 = vmatpush.bf16.msra.mxu0 0
      %1609 = vmatpush.bf16.msra.mxu0 0
      %1610 = vmatpush.bf16.msra.mxu0 0
      %1611 = vmatpush.bf16.msra.mxu0 0
      %1612 = vmatpush.bf16.msra.mxu0 0
      %1613 = vmatpush.bf16.msra.mxu0 0
      %1614 = vmatpush.bf16.msra.mxu0 0
      %1615 = vmatpush.bf16.msra.mxu0 %v1606
      %1616 = vmatmul.bf16.gmra.mxu0 %v1552
      %v1617 = vpop.f32.mrf.mxu0
      %v1618 = vadd.f32 0.0, %v1617
      %v1619 = vpop.f32.mrf.mxu0
      %v1620 = vadd.f32 0.0, %v1619
      %1621 = vmatmul.bf16.gmra.mxu0 %v1555
      %v1622 = vpop.f32.mrf.mxu0
      %v1623 = vadd.f32 0.0, %v1622
      %v1624 = vpop.f32.mrf.mxu0
      %v1625 = vadd.f32 0.0, %v1624
      %1626 = vmatmul.bf16.gmra.mxu0 %v1558
      %v1627 = vpop.f32.mrf.mxu0
      %v1628 = vadd.f32 0.0, %v1627
      %v1629 = vpop.f32.mrf.mxu0
      %v1630 = vadd.f32 0.0, %v1629
      %1631 = vmatmul.bf16.gmra.mxu0 %v1561
      %v1632 = vpop.f32.mrf.mxu0
      %v1633 = vadd.f32 0.0, %v1632
      %v1634 = vpop.f32.mrf.mxu0
      %v1635 = vadd.f32 0.0, %v1634
      %1636 = vmatmul.bf16.gmra.mxu0 %v1564
      %v1637 = vpop.f32.mrf.mxu0
      %v1638 = vadd.f32 0.0, %v1637
      %v1639 = vpop.f32.mrf.mxu0
      %v1640 = vadd.f32 0.0, %v1639
      %1641 = vmatmul.bf16.gmra.mxu0 %v1567
      %v1642 = vpop.f32.mrf.mxu0
      %v1643 = vadd.f32 0.0, %v1642
      %v1644 = vpop.f32.mrf.mxu0
      %v1645 = vadd.f32 0.0, %v1644
      %1646 = vmatmul.bf16.gmra.mxu0 %v1570
      %v1647 = vpop.f32.mrf.mxu0
      %v1648 = vadd.f32 0.0, %v1647
      %v1649 = vpop.f32.mrf.mxu0
      %v1650 = vadd.f32 0.0, %v1649
      %1651 = vmatmul.bf16.gmra.mxu0 %v1573
      %v1652 = vpop.f32.mrf.mxu0
      %v1653 = vadd.f32 0.0, %v1652
      %v1654 = vpop.f32.mrf.mxu0
      %v1655 = vadd.f32 0.0, %v1654
      %1656 = vmatmul.bf16.gmra.mxu0 %v1576
      %v1657 = vpop.f32.mrf.mxu0
      %v1658 = vadd.f32 0.0, %v1657
      %v1659 = vpop.f32.mrf.mxu0
      %v1660 = vadd.f32 0.0, %v1659
      %1661 = vmatmul.bf16.gmra.mxu0 %v1579
      %v1662 = vpop.f32.mrf.mxu0
      %v1663 = vadd.f32 0.0, %v1662
      %v1664 = vpop.f32.mrf.mxu0
      %v1665 = vadd.f32 0.0, %v1664
      %1666 = vmatmul.bf16.gmra.mxu0 %v1582
      %v1667 = vpop.f32.mrf.mxu0
      %v1668 = vadd.f32 0.0, %v1667
      %v1669 = vpop.f32.mrf.mxu0
      %v1670 = vadd.f32 0.0, %v1669
      %1671 = vmatmul.bf16.gmra.mxu0 %v1585
      %v1672 = vpop.f32.mrf.mxu0
      %v1673 = vadd.f32 0.0, %v1672
      %v1674 = vpop.f32.mrf.mxu0
      %v1675 = vadd.f32 0.0, %v1674
      %1676 = vmatmul.bf16.gmra.mxu0 %v1588
      %v1677 = vpop.f32.mrf.mxu0
      %v1678 = vadd.f32 0.0, %v1677
      %v1679 = vpop.f32.mrf.mxu0
      %v1680 = vadd.f32 0.0, %v1679
      %1681 = vmatmul.bf16.gmra.mxu0 %v1591
      %v1682 = vpop.f32.mrf.mxu0
      %v1683 = vadd.f32 0.0, %v1682
      %v1684 = vpop.f32.mrf.mxu0
      %v1685 = vadd.f32 0.0, %v1684
      %1686 = vmatmul.bf16.gmra.mxu0 %v1594
      %v1687 = vpop.f32.mrf.mxu0
      %v1688 = vadd.f32 0.0, %v1687
      %v1689 = vpop.f32.mrf.mxu0
      %v1690 = vadd.f32 0.0, %v1689
      %1691 = vmatmul.bf16.gmra.mxu0 %v1597
      %v1692 = vpop.f32.mrf.mxu0
      %v1693 = vadd.f32 0.0, %v1692
      %v1694 = vpop.f32.mrf.mxu0
      %v1695 = vadd.f32 0.0, %v1694
      %1696 = vmatmul.bf16.gmra.mxu0 %v1600
      %v1697 = vpop.f32.mrf.mxu0
      %v1698 = vadd.f32 0.0, %v1697
      %v1699 = vpop.f32.mrf.mxu0
      %v1700 = vadd.f32 0.0, %v1699
      %1701 = vmatmul.bf16.gmra.mxu0 %v1603
      %v1702 = vpop.f32.mrf.mxu0
      %v1703 = vadd.f32 0.0, %v1702
      %v1704 = vpop.f32.mrf.mxu0
      %v1705 = vadd.f32 0.0, %v1704
      %1706 = vdwg.mxu0
      %v1707 = vadd.f32 %v1338, %v1618
      %v1708 = vadd.f32 %v1339, %v1620
      %v1709 = vadd.f32 %v1340, %v1623
      %v1710 = vadd.f32 %v1341, %v1625
      %v1711 = vadd.f32 %v1342, %v1628
      %v1712 = vadd.f32 %v1343, %v1630
      %v1713 = vadd.f32 %v1344, %v1633
      %v1714 = vadd.f32 %v1345, %v1635
      %v1715 = vadd.f32 %v1346, %v1638
      %v1716 = vadd.f32 %v1347, %v1640
      %v1717 = vadd.f32 %v1348, %v1643
      %v1718 = vadd.f32 %v1349, %v1645
      %v1719 = vadd.f32 %v1350, %v1648
      %v1720 = vadd.f32 %v1351, %v1650
      %v1721 = vadd.f32 %v1352, %v1653
      %v1722 = vadd.f32 %v1353, %v1655
      %v1723 = vadd.f32 %v1354, %v1658
      %v1724 = vadd.f32 %v1355, %v1660
      %v1725 = vadd.f32 %v1356, %v1663
      %v1726 = vadd.f32 %v1357, %v1665
      %v1727 = vadd.f32 %v1358, %v1668
      %v1728 = vadd.f32 %v1359, %v1670
      %v1729 = vadd.f32 %v1360, %v1673
      %v1730 = vadd.f32 %v1361, %v1675
      %v1731 = vadd.f32 %v1362, %v1678
      %v1732 = vadd.f32 %v1363, %v1680
      %v1733 = vadd.f32 %v1364, %v1683
      %v1734 = vadd.f32 %v1365, %v1685
      %v1735 = vadd.f32 %v1366, %v1688
      %v1736 = vadd.f32 %v1367, %v1690
      %v1737 = vadd.f32 %v1368, %v1693
      %v1738 = vadd.f32 %v1369, %v1695
      %v1739 = vadd.f32 %v1370, %v1698
      %v1740 = vadd.f32 %v1371, %v1700
      %v1741 = vadd.f32 %v1372, %v1703
      %v1742 = vadd.f32 %v1373, %v1705
      %v1743 = vld [vmem:[%s192 + $0x8] sm:$0xc]
      %s1744 = scalar_lea.vmem %s1, 10
      %v1745 = vld [vmem:[%s1744] sm:$0x3]
      %v1747 = vunpack.c.l.b16 %v1743
      %v1748 = vpack.c.b16 %v1090, %v1747
      %vm1749 = vcmask 1045504
      %v1750 = vrot.slane %v1748, 2
      %v1751 = vrot.slane %v1127, 2
      %v1752 = vsel %vm1749, %v1750, %v1751
      %v1753 = vrot.slane %v1128, 2
      %v1754 = vsel %vm1749, %v1751, %v1753
      %v1755 = vrot.slane %v1129, 2
      %v1756 = vsel %vm1749, %v1753, %v1755
      %v1757 = vrot.slane %v1130, 2
      %v1758 = vsel %vm1749, %v1755, %v1757
      %v1759 = vrot.slane %v1131, 2
      %v1760 = vsel %vm1749, %v1757, %v1759
      %v1761 = vrot.slane %v1132, 2
      %v1762 = vsel %vm1749, %v1759, %v1761
      %v1763 = vrot.slane %v1133, 2
      %v1764 = vsel %vm1749, %v1761, %v1763
      %v1765 = vrot.slane %v1134, 2
      %v1766 = vsel %vm1749, %v1763, %v1765
      %v1767 = vrot.slane %v1135, 2
      %v1768 = vsel %vm1749, %v1765, %v1767
      %v1769 = vrot.slane %v1136, 2
      %v1770 = vsel %vm1749, %v1767, %v1769
      %v1771 = vrot.slane %v1137, 2
      %v1772 = vsel %vm1749, %v1769, %v1771
      %v1773 = vrot.slane %v1138, 2
      %v1774 = vsel %vm1749, %v1771, %v1773
      %v1775 = vrot.slane %v1139, 2
      %v1776 = vsel %vm1749, %v1773, %v1775
      %v1777 = vrot.slane %v1140, 2
      %v1778 = vsel %vm1749, %v1775, %v1777
      %v1779 = vrot.slane %v1141, 2
      %v1780 = vsel %vm1749, %v1777, %v1779
      %v1781 = vrot.slane %v1142, 2
      %v1782 = vsel %vm1749, %v1779, %v1781
      %v1783 = vrot.slane %v1143, 2
      %v1784 = vsel %vm1749, %v1781, %v1783
      %v1785 = vrot.slane %v1379, 2
      %v1786 = vsel %vm1749, %v1783, %v1785
      %v1788 = vsel %vm481, %v1752, 0
      %v1791 = vsel %vm481, %v1754, 0
      %v1794 = vsel %vm481, %v1756, 0
      %v1797 = vsel %vm481, %v1758, 0
      %v1800 = vsel %vm481, %v1760, 0
      %v1803 = vsel %vm481, %v1762, 0
      %v1806 = vsel %vm481, %v1764, 0
      %v1809 = vsel %vm481, %v1766, 0
      %v1812 = vsel %vm481, %v1768, 0
      %v1815 = vsel %vm481, %v1770, 0
      %v1818 = vsel %vm481, %v1772, 0
      %v1821 = vsel %vm481, %v1774, 0
      %v1824 = vsel %vm481, %v1776, 0
      %v1827 = vsel %vm481, %v1778, 0
      %v1830 = vsel %vm481, %v1780, 0
      %v1833 = vsel %vm481, %v1782, 0
      %v1836 = vsel %vm481, %v1784, 0
      %v1839 = vsel %vm481, %v1786, 0
      %v1842 = vsel %vm536, %v1745, 0
      %1844 = vmatpush.bf16.msra.mxu0 0
      %1845 = vmatpush.bf16.msra.mxu0 0
      %1846 = vmatpush.bf16.msra.mxu0 0
      %1847 = vmatpush.bf16.msra.mxu0 0
      %1848 = vmatpush.bf16.msra.mxu0 0
      %1849 = vmatpush.bf16.msra.mxu0 0
      %1850 = vmatpush.bf16.msra.mxu0 0
      %1851 = vmatpush.bf16.msra.mxu0 %v1842
      %1852 = vmatmul.bf16.gmra.mxu0 %v1788
      %v1853 = vpop.f32.mrf.mxu0
      %v1854 = vadd.f32 0.0, %v1853
      %v1855 = vpop.f32.mrf.mxu0
      %v1856 = vadd.f32 0.0, %v1855
      %1857 = vmatmul.bf16.gmra.mxu0 %v1791
      %v1858 = vpop.f32.mrf.mxu0
      %v1859 = vadd.f32 0.0, %v1858
      %v1860 = vpop.f32.mrf.mxu0
      %v1861 = vadd.f32 0.0, %v1860
      %1862 = vmatmul.bf16.gmra.mxu0 %v1794
      %v1863 = vpop.f32.mrf.mxu0
      %v1864 = vadd.f32 0.0, %v1863
      %v1865 = vpop.f32.mrf.mxu0
      %v1866 = vadd.f32 0.0, %v1865
      %1867 = vmatmul.bf16.gmra.mxu0 %v1797
      %v1868 = vpop.f32.mrf.mxu0
      %v1869 = vadd.f32 0.0, %v1868
      %v1870 = vpop.f32.mrf.mxu0
      %v1871 = vadd.f32 0.0, %v1870
      %1872 = vmatmul.bf16.gmra.mxu0 %v1800
      %v1873 = vpop.f32.mrf.mxu0
      %v1874 = vadd.f32 0.0, %v1873
      %v1875 = vpop.f32.mrf.mxu0
      %v1876 = vadd.f32 0.0, %v1875
      %1877 = vmatmul.bf16.gmra.mxu0 %v1803
      %v1878 = vpop.f32.mrf.mxu0
      %v1879 = vadd.f32 0.0, %v1878
      %v1880 = vpop.f32.mrf.mxu0
      %v1881 = vadd.f32 0.0, %v1880
      %1882 = vmatmul.bf16.gmra.mxu0 %v1806
      %v1883 = vpop.f32.mrf.mxu0
      %v1884 = vadd.f32 0.0, %v1883
      %v1885 = vpop.f32.mrf.mxu0
      %v1886 = vadd.f32 0.0, %v1885
      %1887 = vmatmul.bf16.gmra.mxu0 %v1809
      %v1888 = vpop.f32.mrf.mxu0
      %v1889 = vadd.f32 0.0, %v1888
      %v1890 = vpop.f32.mrf.mxu0
      %v1891 = vadd.f32 0.0, %v1890
      %1892 = vmatmul.bf16.gmra.mxu0 %v1812
      %v1893 = vpop.f32.mrf.mxu0
      %v1894 = vadd.f32 0.0, %v1893
      %v1895 = vpop.f32.mrf.mxu0
      %v1896 = vadd.f32 0.0, %v1895
      %1897 = vmatmul.bf16.gmra.mxu0 %v1815
      %v1898 = vpop.f32.mrf.mxu0
      %v1899 = vadd.f32 0.0, %v1898
      %v1900 = vpop.f32.mrf.mxu0
      %v1901 = vadd.f32 0.0, %v1900
      %1902 = vmatmul.bf16.gmra.mxu0 %v1818
      %v1903 = vpop.f32.mrf.mxu0
      %v1904 = vadd.f32 0.0, %v1903
      %v1905 = vpop.f32.mrf.mxu0
      %v1906 = vadd.f32 0.0, %v1905
      %1907 = vmatmul.bf16.gmra.mxu0 %v1821
      %v1908 = vpop.f32.mrf.mxu0
      %v1909 = vadd.f32 0.0, %v1908
      %v1910 = vpop.f32.mrf.mxu0
      %v1911 = vadd.f32 0.0, %v1910
      %1912 = vmatmul.bf16.gmra.mxu0 %v1824
      %v1913 = vpop.f32.mrf.mxu0
      %v1914 = vadd.f32 0.0, %v1913
      %v1915 = vpop.f32.mrf.mxu0
      %v1916 = vadd.f32 0.0, %v1915
      %1917 = vmatmul.bf16.gmra.mxu0 %v1827
      %v1918 = vpop.f32.mrf.mxu0
      %v1919 = vadd.f32 0.0, %v1918
      %v1920 = vpop.f32.mrf.mxu0
      %v1921 = vadd.f32 0.0, %v1920
      %1922 = vmatmul.bf16.gmra.mxu0 %v1830
      %v1923 = vpop.f32.mrf.mxu0
      %v1924 = vadd.f32 0.0, %v1923
      %v1925 = vpop.f32.mrf.mxu0
      %v1926 = vadd.f32 0.0, %v1925
      %1927 = vmatmul.bf16.gmra.mxu0 %v1833
      %v1928 = vpop.f32.mrf.mxu0
      %v1929 = vadd.f32 0.0, %v1928
      %v1930 = vpop.f32.mrf.mxu0
      %v1931 = vadd.f32 0.0, %v1930
      %1932 = vmatmul.bf16.gmra.mxu0 %v1836
      %v1933 = vpop.f32.mrf.mxu0
      %v1934 = vadd.f32 0.0, %v1933
      %v1935 = vpop.f32.mrf.mxu0
      %v1936 = vadd.f32 0.0, %v1935
      %1937 = vmatmul.bf16.gmra.mxu0 %v1839
      %v1938 = vpop.f32.mrf.mxu0
      %v1939 = vadd.f32 0.0, %v1938
      %v1940 = vpop.f32.mrf.mxu0
      %v1941 = vadd.f32 0.0, %v1940
      %1942 = vdwg.mxu0
      %v1943 = vadd.f32 %v1707, %v1854
      %v1944 = vadd.f32 %v1708, %v1856
      %v1945 = vadd.f32 %v1709, %v1859
      %v1946 = vadd.f32 %v1710, %v1861
      %v1947 = vadd.f32 %v1711, %v1864
      %v1948 = vadd.f32 %v1712, %v1866
      %v1949 = vadd.f32 %v1713, %v1869
      %v1950 = vadd.f32 %v1714, %v1871
      %v1951 = vadd.f32 %v1715, %v1874
      %v1952 = vadd.f32 %v1716, %v1876
      %v1953 = vadd.f32 %v1717, %v1879
      %v1954 = vadd.f32 %v1718, %v1881
      %v1955 = vadd.f32 %v1719, %v1884
      %v1956 = vadd.f32 %v1720, %v1886
      %v1957 = vadd.f32 %v1721, %v1889
      %v1958 = vadd.f32 %v1722, %v1891
      %v1959 = vadd.f32 %v1723, %v1894
      %v1960 = vadd.f32 %v1724, %v1896
      %v1961 = vadd.f32 %v1725, %v1899
      %v1962 = vadd.f32 %v1726, %v1901
      %v1963 = vadd.f32 %v1727, %v1904
      %v1964 = vadd.f32 %v1728, %v1906
      %v1965 = vadd.f32 %v1729, %v1909
      %v1966 = vadd.f32 %v1730, %v1911
      %v1967 = vadd.f32 %v1731, %v1914
      %v1968 = vadd.f32 %v1732, %v1916
      %v1969 = vadd.f32 %v1733, %v1919
      %v1970 = vadd.f32 %v1734, %v1921
      %v1971 = vadd.f32 %v1735, %v1924
      %v1972 = vadd.f32 %v1736, %v1926
      %v1973 = vadd.f32 %v1737, %v1929
      %v1974 = vadd.f32 %v1738, %v1931
      %v1975 = vadd.f32 %v1739, %v1934
      %v1976 = vadd.f32 %v1740, %v1936
      %v1977 = vadd.f32 %v1741, %v1939
      %v1978 = vadd.f32 %v1742, %v1941
      %v1979 = vld [vmem:[%s192 + $0x10] sm:$0xc]
      %v1980 = vld [vmem:[%s192 + $0x14] sm:$0xf]
      %v1981 = vld [vmem:[%s192 + $0x18] sm:$0xf]
      %v1982 = vld [vmem:[%s192 + $0x1c] sm:$0xf]
      %v1983 = vld [vmem:[%s192 + $0x20] sm:$0xf]
      %v1984 = vld [vmem:[%s192 + $0x24] sm:$0xf]
      %v1985 = vld [vmem:[%s192 + $0x28] sm:$0xf]
      %v1986 = vld [vmem:[%s192 + $0x2c] sm:$0xf]
      %v1987 = vld [vmem:[%s192 + $0x30] sm:$0xf]
      %v1988 = vld [vmem:[%s192 + $0x34] sm:$0xf]
      %v1989 = vld [vmem:[%s192 + $0x38] sm:$0xf]
      %v1990 = vld [vmem:[%s192 + $0x3c] sm:$0xf]
      %v1991 = vld [vmem:[%s192 + $0x40] sm:$0xf]
      %v1992 = vld [vmem:[%s192 + $0x44] sm:$0xf]
      %v1993 = vld [vmem:[%s192 + $0x48] sm:$0xf]
      %v1994 = vld [vmem:[%s192 + $0x4c] sm:$0xf]
      %v1995 = vld [vmem:[%s192 + $0x50] sm:$0xf]
      %v1996 = vld [vmem:[%s192 + $0x54] sm:$0xf]
      %v1997 = vld [vmem:[%s192 + $0x58] sm:$0xf]
      %v1998 = vld [vmem:[%s192 + $0x5c] sm:$0xf]
      %v1999 = vld [vmem:[%s192 + $0x60] sm:$0xf]
      %v2000 = vld [vmem:[%s192 + $0x64] sm:$0xf]
      %v2001 = vld [vmem:[%s192 + $0x68] sm:$0xf]
      %v2002 = vld [vmem:[%s192 + $0x6c] sm:$0xf]
      %v2003 = vld [vmem:[%s192 + $0x70] sm:$0xf]
      %v2004 = vld [vmem:[%s192 + $0x74] sm:$0xf]
      %v2005 = vld [vmem:[%s192 + $0x78] sm:$0xf]
      %v2006 = vld [vmem:[%s192 + $0x7c] sm:$0xf]
      %v2007 = vld [vmem:[%s192 + $0x80] sm:$0xf]
      %v2008 = vld [vmem:[%s192 + $0x84] sm:$0xf]
      %v2009 = vld [vmem:[%s192 + $0x88] sm:$0xf]
      %v2010 = vld [vmem:[%s192 + $0x8c] sm:$0xf]
      %v2011 = vld [vmem:[%s192 + $0x90] sm:$0xf]
      %v2012 = vld [vmem:[%s192 + $0x94] sm:$0xf]
      %v2013 = vld [vmem:[%s192 + $0x98] sm:$0xf]
      %v2014 = vld [vmem:[%s192 + $0x9c] sm:$0xf]
      %v2015 = vld [vmem:[%s192 + $0xa0] sm:$0x3]
      %s2016 = scalar_lea.vmem %s1, 12
      %v2017 = vld [vmem:[%s2016] sm:$0x3]
      %v2055 = vunpack.c.l.b16 %v1979
      %v2056 = vunpack.c.l.b16 %v1980
      %v2057 = vunpack.c.l.b16 %v1981
      %v2058 = vunpack.c.l.b16 %v1982
      %v2059 = vunpack.c.l.b16 %v1983
      %v2060 = vunpack.c.l.b16 %v1984
      %v2061 = vunpack.c.l.b16 %v1985
      %v2062 = vunpack.c.l.b16 %v1986
      %v2063 = vunpack.c.l.b16 %v1987
      %v2064 = vunpack.c.l.b16 %v1988
      %v2065 = vunpack.c.l.b16 %v1989
      %v2066 = vunpack.c.l.b16 %v1990
      %v2067 = vunpack.c.l.b16 %v1991
      %v2068 = vunpack.c.l.b16 %v1992
      %v2069 = vunpack.c.l.b16 %v1993
      %v2070 = vunpack.c.l.b16 %v1994
      %v2071 = vunpack.c.l.b16 %v1995
      %v2072 = vunpack.c.l.b16 %v1996
      %v2073 = vunpack.c.l.b16 %v1997
      %v2074 = vunpack.c.l.b16 %v1998
      %v2075 = vunpack.c.l.b16 %v1999
      %v2076 = vunpack.c.l.b16 %v2000
      %v2077 = vunpack.c.l.b16 %v2001
      %v2078 = vunpack.c.l.b16 %v2002
      %v2079 = vunpack.c.l.b16 %v2003
      %v2080 = vunpack.c.l.b16 %v2004
      %v2081 = vunpack.c.l.b16 %v2005
      %v2082 = vunpack.c.l.b16 %v2006
      %v2083 = vunpack.c.l.b16 %v2007
      %v2084 = vunpack.c.l.b16 %v2008
      %v2085 = vunpack.c.l.b16 %v2009
      %v2086 = vunpack.c.l.b16 %v2010
      %v2087 = vunpack.c.l.b16 %v2011
      %v2088 = vunpack.c.l.b16 %v2012
      %v2089 = vunpack.c.l.b16 %v2013
      %v2090 = vunpack.c.l.b16 %v2014
      %v2091 = vunpack.c.l.b16 %v2015
      %v2092 = vpack.c.b16 %v2056, %v2055
      %v2093 = vpack.c.b16 %v2058, %v2057
      %v2094 = vpack.c.b16 %v2060, %v2059
      %v2095 = vpack.c.b16 %v2062, %v2061
      %v2096 = vpack.c.b16 %v2064, %v2063
      %v2097 = vpack.c.b16 %v2066, %v2065
      %v2098 = vpack.c.b16 %v2068, %v2067
      %v2099 = vpack.c.b16 %v2070, %v2069
      %v2100 = vpack.c.b16 %v2072, %v2071
      %v2101 = vpack.c.b16 %v2074, %v2073
      %v2102 = vpack.c.b16 %v2076, %v2075
      %v2103 = vpack.c.b16 %v2078, %v2077
      %v2104 = vpack.c.b16 %v2080, %v2079
      %v2105 = vpack.c.b16 %v2082, %v2081
      %v2106 = vpack.c.b16 %v2084, %v2083
      %v2107 = vpack.c.b16 %v2086, %v2085
      %v2108 = vpack.c.b16 %v2088, %v2087
      %v2109 = vpack.c.b16 %v2090, %v2089
      %v2110 = vpack.c.b16 %v2091, %v2091
      %v2111 = vrot.slane %v2092, 2
      %v2112 = vrot.slane %v2093, 2
      %v2113 = vsel %vm1749, %v2111, %v2112
      %v2114 = vrot.slane %v2094, 2
      %v2115 = vsel %vm1749, %v2112, %v2114
      %v2116 = vrot.slane %v2095, 2
      %v2117 = vsel %vm1749, %v2114, %v2116
      %v2118 = vrot.slane %v2096, 2
      %v2119 = vsel %vm1749, %v2116, %v2118
      %v2120 = vrot.slane %v2097, 2
      %v2121 = vsel %vm1749, %v2118, %v2120
      %v2122 = vrot.slane %v2098, 2
      %v2123 = vsel %vm1749, %v2120, %v2122
      %v2124 = vrot.slane %v2099, 2
      %v2125 = vsel %vm1749, %v2122, %v2124
      %v2126 = vrot.slane %v2100, 2
      %v2127 = vsel %vm1749, %v2124, %v2126
      %v2128 = vrot.slane %v2101, 2
      %v2129 = vsel %vm1749, %v2126, %v2128
      %v2130 = vrot.slane %v2102, 2
      %v2131 = vsel %vm1749, %v2128, %v2130
      %v2132 = vrot.slane %v2103, 2
      %v2133 = vsel %vm1749, %v2130, %v2132
      %v2134 = vrot.slane %v2104, 2
      %v2135 = vsel %vm1749, %v2132, %v2134
      %v2136 = vrot.slane %v2105, 2
      %v2137 = vsel %vm1749, %v2134, %v2136
      %v2138 = vrot.slane %v2106, 2
      %v2139 = vsel %vm1749, %v2136, %v2138
      %v2140 = vrot.slane %v2107, 2
      %v2141 = vsel %vm1749, %v2138, %v2140
      %v2142 = vrot.slane %v2108, 2
      %v2143 = vsel %vm1749, %v2140, %v2142
      %v2144 = vrot.slane %v2109, 2
      %v2145 = vsel %vm1749, %v2142, %v2144
      %v2146 = vrot.slane %v2110, 2
      %v2147 = vsel %vm1749, %v2144, %v2146
      %v2149 = vsel %vm481, %v2113, 0
      %v2152 = vsel %vm481, %v2115, 0
      %v2155 = vsel %vm481, %v2117, 0
      %v2158 = vsel %vm481, %v2119, 0
      %v2161 = vsel %vm481, %v2121, 0
      %v2164 = vsel %vm481, %v2123, 0
      %v2167 = vsel %vm481, %v2125, 0
      %v2170 = vsel %vm481, %v2127, 0
      %v2173 = vsel %vm481, %v2129, 0
      %v2176 = vsel %vm481, %v2131, 0
      %v2179 = vsel %vm481, %v2133, 0
      %v2182 = vsel %vm481, %v2135, 0
      %v2185 = vsel %vm481, %v2137, 0
      %v2188 = vsel %vm481, %v2139, 0
      %v2191 = vsel %vm481, %v2141, 0
      %v2194 = vsel %vm481, %v2143, 0
      %v2197 = vsel %vm481, %v2145, 0
      %v2200 = vsel %vm481, %v2147, 0
      %v2203 = vsel %vm536, %v2017, 0
      %2205 = vmatpush.bf16.msra.mxu0 0
      %2206 = vmatpush.bf16.msra.mxu0 0
      %2207 = vmatpush.bf16.msra.mxu0 0
      %2208 = vmatpush.bf16.msra.mxu0 0
      %2209 = vmatpush.bf16.msra.mxu0 0
      %2210 = vmatpush.bf16.msra.mxu0 0
      %2211 = vmatpush.bf16.msra.mxu0 0
      %2212 = vmatpush.bf16.msra.mxu0 %v2203
      %2213 = vmatmul.bf16.gmra.mxu0 %v2149
      %v2214 = vpop.f32.mrf.mxu0
      %v2215 = vadd.f32 0.0, %v2214
      %v2216 = vpop.f32.mrf.mxu0
      %v2217 = vadd.f32 0.0, %v2216
      %2218 = vmatmul.bf16.gmra.mxu0 %v2152
      %v2219 = vpop.f32.mrf.mxu0
      %v2220 = vadd.f32 0.0, %v2219
      %v2221 = vpop.f32.mrf.mxu0
      %v2222 = vadd.f32 0.0, %v2221
      %2223 = vmatmul.bf16.gmra.mxu0 %v2155
      %v2224 = vpop.f32.mrf.mxu0
      %v2225 = vadd.f32 0.0, %v2224
      %v2226 = vpop.f32.mrf.mxu0
      %v2227 = vadd.f32 0.0, %v2226
      %2228 = vmatmul.bf16.gmra.mxu0 %v2158
      %v2229 = vpop.f32.mrf.mxu0
      %v2230 = vadd.f32 0.0, %v2229
      %v2231 = vpop.f32.mrf.mxu0
      %v2232 = vadd.f32 0.0, %v2231
      %2233 = vmatmul.bf16.gmra.mxu0 %v2161
      %v2234 = vpop.f32.mrf.mxu0
      %v2235 = vadd.f32 0.0, %v2234
      %v2236 = vpop.f32.mrf.mxu0
      %v2237 = vadd.f32 0.0, %v2236
      %2238 = vmatmul.bf16.gmra.mxu0 %v2164
      %v2239 = vpop.f32.mrf.mxu0
      %v2240 = vadd.f32 0.0, %v2239
      %v2241 = vpop.f32.mrf.mxu0
      %v2242 = vadd.f32 0.0, %v2241
      %2243 = vmatmul.bf16.gmra.mxu0 %v2167
      %v2244 = vpop.f32.mrf.mxu0
      %v2245 = vadd.f32 0.0, %v2244
      %v2246 = vpop.f32.mrf.mxu0
      %v2247 = vadd.f32 0.0, %v2246
      %2248 = vmatmul.bf16.gmra.mxu0 %v2170
      %v2249 = vpop.f32.mrf.mxu0
      %v2250 = vadd.f32 0.0, %v2249
      %v2251 = vpop.f32.mrf.mxu0
      %v2252 = vadd.f32 0.0, %v2251
      %2253 = vmatmul.bf16.gmra.mxu0 %v2173
      %v2254 = vpop.f32.mrf.mxu0
      %v2255 = vadd.f32 0.0, %v2254
      %v2256 = vpop.f32.mrf.mxu0
      %v2257 = vadd.f32 0.0, %v2256
      %2258 = vmatmul.bf16.gmra.mxu0 %v2176
      %v2259 = vpop.f32.mrf.mxu0
      %v2260 = vadd.f32 0.0, %v2259
      %v2261 = vpop.f32.mrf.mxu0
      %v2262 = vadd.f32 0.0, %v2261
      %2263 = vmatmul.bf16.gmra.mxu0 %v2179
      %v2264 = vpop.f32.mrf.mxu0
      %v2265 = vadd.f32 0.0, %v2264
      %v2266 = vpop.f32.mrf.mxu0
      %v2267 = vadd.f32 0.0, %v2266
      %2268 = vmatmul.bf16.gmra.mxu0 %v2182
      %v2269 = vpop.f32.mrf.mxu0
      %v2270 = vadd.f32 0.0, %v2269
      %v2271 = vpop.f32.mrf.mxu0
      %v2272 = vadd.f32 0.0, %v2271
      %2273 = vmatmul.bf16.gmra.mxu0 %v2185
      %v2274 = vpop.f32.mrf.mxu0
      %v2275 = vadd.f32 0.0, %v2274
      %v2276 = vpop.f32.mrf.mxu0
      %v2277 = vadd.f32 0.0, %v2276
      %2278 = vmatmul.bf16.gmra.mxu0 %v2188
      %v2279 = vpop.f32.mrf.mxu0
      %v2280 = vadd.f32 0.0, %v2279
      %v2281 = vpop.f32.mrf.mxu0
      %v2282 = vadd.f32 0.0, %v2281
      %2283 = vmatmul.bf16.gmra.mxu0 %v2191
      %v2284 = vpop.f32.mrf.mxu0
      %v2285 = vadd.f32 0.0, %v2284
      %v2286 = vpop.f32.mrf.mxu0
      %v2287 = vadd.f32 0.0, %v2286
      %2288 = vmatmul.bf16.gmra.mxu0 %v2194
      %v2289 = vpop.f32.mrf.mxu0
      %v2290 = vadd.f32 0.0, %v2289
      %v2291 = vpop.f32.mrf.mxu0
      %v2292 = vadd.f32 0.0, %v2291
      %2293 = vmatmul.bf16.gmra.mxu0 %v2197
      %v2294 = vpop.f32.mrf.mxu0
      %v2295 = vadd.f32 0.0, %v2294
      %v2296 = vpop.f32.mrf.mxu0
      %v2297 = vadd.f32 0.0, %v2296
      %2298 = vmatmul.bf16.gmra.mxu0 %v2200
      %v2299 = vpop.f32.mrf.mxu0
      %v2300 = vadd.f32 0.0, %v2299
      %v2301 = vpop.f32.mrf.mxu0
      %v2302 = vadd.f32 0.0, %v2301
      %2303 = vdwg.mxu0
      %v2304 = vadd.f32 %v1943, %v2215
      %v2305 = vadd.f32 %v1944, %v2217
      %v2306 = vadd.f32 %v1945, %v2220
      %v2307 = vadd.f32 %v1946, %v2222
      %v2308 = vadd.f32 %v1947, %v2225
      %v2309 = vadd.f32 %v1948, %v2227
      %v2310 = vadd.f32 %v1949, %v2230
      %v2311 = vadd.f32 %v1950, %v2232
      %v2312 = vadd.f32 %v1951, %v2235
      %v2313 = vadd.f32 %v1952, %v2237
      %v2314 = vadd.f32 %v1953, %v2240
      %v2315 = vadd.f32 %v1954, %v2242
      %v2316 = vadd.f32 %v1955, %v2245
      %v2317 = vadd.f32 %v1956, %v2247
      %v2318 = vadd.f32 %v1957, %v2250
      %v2319 = vadd.f32 %v1958, %v2252
      %v2320 = vadd.f32 %v1959, %v2255
      %v2321 = vadd.f32 %v1960, %v2257
      %v2322 = vadd.f32 %v1961, %v2260
      %v2323 = vadd.f32 %v1962, %v2262
      %v2324 = vadd.f32 %v1963, %v2265
      %v2325 = vadd.f32 %v1964, %v2267
      %v2326 = vadd.f32 %v1965, %v2270
      %v2327 = vadd.f32 %v1966, %v2272
      %v2328 = vadd.f32 %v1967, %v2275
      %v2329 = vadd.f32 %v1968, %v2277
      %v2330 = vadd.f32 %v1969, %v2280
      %v2331 = vadd.f32 %v1970, %v2282
      %v2332 = vadd.f32 %v1971, %v2285
      %v2333 = vadd.f32 %v1972, %v2287
      %v2334 = vadd.f32 %v1973, %v2290
      %v2335 = vadd.f32 %v1974, %v2292
      %v2336 = vadd.f32 %v1975, %v2295
      %v2337 = vadd.f32 %v1976, %v2297
      %v2338 = vadd.f32 %v1977, %v2300
      %v2339 = vadd.f32 %v1978, %v2302
      %v2340 = vld [vmem:[%s192 + $0xa0] sm:$0x7]
      %s2341 = scalar_lea.vmem %s1, 14
      %v2342 = vld [vmem:[%s2341] sm:$0x3]
      %v2344 = vunpack.c.l.b16 %v2340
      %v2345 = vpack.c.b16 %v2344, %v2344
      %vm2346 = vsmask.f32 5376
      %v2348 = vshrl.u32 %v2092, 16
      %v2350 = vrot.slane %v2348, 2
      %v2351 = vshll.u32 %v2092, 16
      %v2353 = vrot.slane %v2351, 3
      %v2354 = vor.u32 %v2350, %v2353
      %v2356 = vshrl.u32 %v2093, 16
      %v2358 = vrot.slane %v2356, 2
      %v2359 = vshll.u32 %v2093, 16
      %v2361 = vrot.slane %v2359, 3
      %v2362 = vor.u32 %v2358, %v2361
      %v2363 = vsel %vm2346, %v2354, %v2362
      %v2365 = vshrl.u32 %v2094, 16
      %v2367 = vrot.slane %v2365, 2
      %v2368 = vshll.u32 %v2094, 16
      %v2370 = vrot.slane %v2368, 3
      %v2371 = vor.u32 %v2367, %v2370
      %v2372 = vsel %vm2346, %v2362, %v2371
      %v2374 = vshrl.u32 %v2095, 16
      %v2376 = vrot.slane %v2374, 2
      %v2377 = vshll.u32 %v2095, 16
      %v2379 = vrot.slane %v2377, 3
      %v2380 = vor.u32 %v2376, %v2379
      %v2381 = vsel %vm2346, %v2371, %v2380
      %v2383 = vshrl.u32 %v2096, 16
      %v2385 = vrot.slane %v2383, 2
      %v2386 = vshll.u32 %v2096, 16
      %v2388 = vrot.slane %v2386, 3
      %v2389 = vor.u32 %v2385, %v2388
      %v2390 = vsel %vm2346, %v2380, %v2389
      %v2392 = vshrl.u32 %v2097, 16
      %v2394 = vrot.slane %v2392, 2
      %v2395 = vshll.u32 %v2097, 16
      %v2397 = vrot.slane %v2395, 3
      %v2398 = vor.u32 %v2394, %v2397
      %v2399 = vsel %vm2346, %v2389, %v2398
      %v2401 = vshrl.u32 %v2098, 16
      %v2403 = vrot.slane %v2401, 2
      %v2404 = vshll.u32 %v2098, 16
      %v2406 = vrot.slane %v2404, 3
      %v2407 = vor.u32 %v2403, %v2406
      %v2408 = vsel %vm2346, %v2398, %v2407
      %v2410 = vshrl.u32 %v2099, 16
      %v2412 = vrot.slane %v2410, 2
      %v2413 = vshll.u32 %v2099, 16
      %v2415 = vrot.slane %v2413, 3
      %v2416 = vor.u32 %v2412, %v2415
      %v2417 = vsel %vm2346, %v2407, %v2416
      %v2419 = vshrl.u32 %v2100, 16
      %v2421 = vrot.slane %v2419, 2
      %v2422 = vshll.u32 %v2100, 16
      %v2424 = vrot.slane %v2422, 3
      %v2425 = vor.u32 %v2421, %v2424
      %v2426 = vsel %vm2346, %v2416, %v2425
      %v2428 = vshrl.u32 %v2101, 16
      %v2430 = vrot.slane %v2428, 2
      %v2431 = vshll.u32 %v2101, 16
      %v2433 = vrot.slane %v2431, 3
      %v2434 = vor.u32 %v2430, %v2433
      %v2435 = vsel %vm2346, %v2425, %v2434
      %v2437 = vshrl.u32 %v2102, 16
      %v2439 = vrot.slane %v2437, 2
      %v2440 = vshll.u32 %v2102, 16
      %v2442 = vrot.slane %v2440, 3
      %v2443 = vor.u32 %v2439, %v2442
      %v2444 = vsel %vm2346, %v2434, %v2443
      %v2446 = vshrl.u32 %v2103, 16
      %v2448 = vrot.slane %v2446, 2
      %v2449 = vshll.u32 %v2103, 16
      %v2451 = vrot.slane %v2449, 3
      %v2452 = vor.u32 %v2448, %v2451
      %v2453 = vsel %vm2346, %v2443, %v2452
      %v2455 = vshrl.u32 %v2104, 16
      %v2457 = vrot.slane %v2455, 2
      %v2458 = vshll.u32 %v2104, 16
      %v2460 = vrot.slane %v2458, 3
      %v2461 = vor.u32 %v2457, %v2460
      %v2462 = vsel %vm2346, %v2452, %v2461
      %v2464 = vshrl.u32 %v2105, 16
      %v2466 = vrot.slane %v2464, 2
      %v2467 = vshll.u32 %v2105, 16
      %v2469 = vrot.slane %v2467, 3
      %v2470 = vor.u32 %v2466, %v2469
      %v2471 = vsel %vm2346, %v2461, %v2470
      %v2473 = vshrl.u32 %v2106, 16
      %v2475 = vrot.slane %v2473, 2
      %v2476 = vshll.u32 %v2106, 16
      %v2478 = vrot.slane %v2476, 3
      %v2479 = vor.u32 %v2475, %v2478
      %v2480 = vsel %vm2346, %v2470, %v2479
      %v2482 = vshrl.u32 %v2107, 16
      %v2484 = vrot.slane %v2482, 2
      %v2485 = vshll.u32 %v2107, 16
      %v2487 = vrot.slane %v2485, 3
      %v2488 = vor.u32 %v2484, %v2487
      %v2489 = vsel %vm2346, %v2479, %v2488
      %v2491 = vshrl.u32 %v2108, 16
      %v2493 = vrot.slane %v2491, 2
      %v2494 = vshll.u32 %v2108, 16
      %v2496 = vrot.slane %v2494, 3
      %v2497 = vor.u32 %v2493, %v2496
      %v2498 = vsel %vm2346, %v2488, %v2497
      %v2500 = vshrl.u32 %v2109, 16
      %v2502 = vrot.slane %v2500, 2
      %v2503 = vshll.u32 %v2109, 16
      %v2505 = vrot.slane %v2503, 3
      %v2506 = vor.u32 %v2502, %v2505
      %v2507 = vsel %vm2346, %v2497, %v2506
      %v2509 = vshrl.u32 %v2345, 16
      %v2511 = vrot.slane %v2509, 2
      %v2512 = vshll.u32 %v2345, 16
      %v2514 = vrot.slane %v2512, 3
      %v2515 = vor.u32 %v2511, %v2514
      %v2516 = vsel %vm2346, %v2506, %v2515
      %v2518 = vsel %vm481, %v2363, 0
      %v2521 = vsel %vm481, %v2372, 0
      %v2524 = vsel %vm481, %v2381, 0
      %v2527 = vsel %vm481, %v2390, 0
      %v2530 = vsel %vm481, %v2399, 0
      %v2533 = vsel %vm481, %v2408, 0
      %v2536 = vsel %vm481, %v2417, 0
      %v2539 = vsel %vm481, %v2426, 0
      %v2542 = vsel %vm481, %v2435, 0
      %v2545 = vsel %vm481, %v2444, 0
      %v2548 = vsel %vm481, %v2453, 0
      %v2551 = vsel %vm481, %v2462, 0
      %v2554 = vsel %vm481, %v2471, 0
      %v2557 = vsel %vm481, %v2480, 0
      %v2560 = vsel %vm481, %v2489, 0
      %v2563 = vsel %vm481, %v2498, 0
      %v2566 = vsel %vm481, %v2507, 0
      %v2569 = vsel %vm481, %v2516, 0
      %v2572 = vsel %vm536, %v2342, 0
      %2574 = vmatpush.bf16.msra.mxu0 0
      %2575 = vmatpush.bf16.msra.mxu0 0
      %2576 = vmatpush.bf16.msra.mxu0 0
      %2577 = vmatpush.bf16.msra.mxu0 0
      %2578 = vmatpush.bf16.msra.mxu0 0
      %2579 = vmatpush.bf16.msra.mxu0 0
      %2580 = vmatpush.bf16.msra.mxu0 0
      %2581 = vmatpush.bf16.msra.mxu0 %v2572
      %2582 = vmatmul.bf16.gmra.mxu0 %v2518
      %v2583 = vpop.f32.mrf.mxu0
      %v2584 = vadd.f32 0.0, %v2583
      %v2585 = vpop.f32.mrf.mxu0
      %v2586 = vadd.f32 0.0, %v2585
      %2587 = vmatmul.bf16.gmra.mxu0 %v2521
      %v2588 = vpop.f32.mrf.mxu0
      %v2589 = vadd.f32 0.0, %v2588
      %v2590 = vpop.f32.mrf.mxu0
      %v2591 = vadd.f32 0.0, %v2590
      %2592 = vmatmul.bf16.gmra.mxu0 %v2524
      %v2593 = vpop.f32.mrf.mxu0
      %v2594 = vadd.f32 0.0, %v2593
      %v2595 = vpop.f32.mrf.mxu0
      %v2596 = vadd.f32 0.0, %v2595
      %2597 = vmatmul.bf16.gmra.mxu0 %v2527
      %v2598 = vpop.f32.mrf.mxu0
      %v2599 = vadd.f32 0.0, %v2598
      %v2600 = vpop.f32.mrf.mxu0
      %v2601 = vadd.f32 0.0, %v2600
      %2602 = vmatmul.bf16.gmra.mxu0 %v2530
      %v2603 = vpop.f32.mrf.mxu0
      %v2604 = vadd.f32 0.0, %v2603
      %v2605 = vpop.f32.mrf.mxu0
      %v2606 = vadd.f32 0.0, %v2605
      %2607 = vmatmul.bf16.gmra.mxu0 %v2533
      %v2608 = vpop.f32.mrf.mxu0
      %v2609 = vadd.f32 0.0, %v2608
      %v2610 = vpop.f32.mrf.mxu0
      %v2611 = vadd.f32 0.0, %v2610
      %2612 = vmatmul.bf16.gmra.mxu0 %v2536
      %v2613 = vpop.f32.mrf.mxu0
      %v2614 = vadd.f32 0.0, %v2613
      %v2615 = vpop.f32.mrf.mxu0
      %v2616 = vadd.f32 0.0, %v2615
      %2617 = vmatmul.bf16.gmra.mxu0 %v2539
      %v2618 = vpop.f32.mrf.mxu0
      %v2619 = vadd.f32 0.0, %v2618
      %v2620 = vpop.f32.mrf.mxu0
      %v2621 = vadd.f32 0.0, %v2620
      %2622 = vmatmul.bf16.gmra.mxu0 %v2542
      %v2623 = vpop.f32.mrf.mxu0
      %v2624 = vadd.f32 0.0, %v2623
      %v2625 = vpop.f32.mrf.mxu0
      %v2626 = vadd.f32 0.0, %v2625
      %2627 = vmatmul.bf16.gmra.mxu0 %v2545
      %v2628 = vpop.f32.mrf.mxu0
      %v2629 = vadd.f32 0.0, %v2628
      %v2630 = vpop.f32.mrf.mxu0
      %v2631 = vadd.f32 0.0, %v2630
      %2632 = vmatmul.bf16.gmra.mxu0 %v2548
      %v2633 = vpop.f32.mrf.mxu0
      %v2634 = vadd.f32 0.0, %v2633
      %v2635 = vpop.f32.mrf.mxu0
      %v2636 = vadd.f32 0.0, %v2635
      %2637 = vmatmul.bf16.gmra.mxu0 %v2551
      %v2638 = vpop.f32.mrf.mxu0
      %v2639 = vadd.f32 0.0, %v2638
      %v2640 = vpop.f32.mrf.mxu0
      %v2641 = vadd.f32 0.0, %v2640
      %2642 = vmatmul.bf16.gmra.mxu0 %v2554
      %v2643 = vpop.f32.mrf.mxu0
      %v2644 = vadd.f32 0.0, %v2643
      %v2645 = vpop.f32.mrf.mxu0
      %v2646 = vadd.f32 0.0, %v2645
      %2647 = vmatmul.bf16.gmra.mxu0 %v2557
      %v2648 = vpop.f32.mrf.mxu0
      %v2649 = vadd.f32 0.0, %v2648
      %v2650 = vpop.f32.mrf.mxu0
      %v2651 = vadd.f32 0.0, %v2650
      %2652 = vmatmul.bf16.gmra.mxu0 %v2560
      %v2653 = vpop.f32.mrf.mxu0
      %v2654 = vadd.f32 0.0, %v2653
      %v2655 = vpop.f32.mrf.mxu0
      %v2656 = vadd.f32 0.0, %v2655
      %2657 = vmatmul.bf16.gmra.mxu0 %v2563
      %v2658 = vpop.f32.mrf.mxu0
      %v2659 = vadd.f32 0.0, %v2658
      %v2660 = vpop.f32.mrf.mxu0
      %v2661 = vadd.f32 0.0, %v2660
      %2662 = vmatmul.bf16.gmra.mxu0 %v2566
      %v2663 = vpop.f32.mrf.mxu0
      %v2664 = vadd.f32 0.0, %v2663
      %v2665 = vpop.f32.mrf.mxu0
      %v2666 = vadd.f32 0.0, %v2665
      %2667 = vmatmul.bf16.gmra.mxu0 %v2569
      %v2668 = vpop.f32.mrf.mxu0
      %v2669 = vadd.f32 0.0, %v2668
      %v2670 = vpop.f32.mrf.mxu0
      %v2671 = vadd.f32 0.0, %v2670
      %2672 = vdwg.mxu0
      %v2673 = vadd.f32 %v2304, %v2584
      %v2674 = vadd.f32 %v2305, %v2586
      %v2675 = vadd.f32 %v2306, %v2589
      %v2676 = vadd.f32 %v2307, %v2591
      %v2677 = vadd.f32 %v2308, %v2594
      %v2678 = vadd.f32 %v2309, %v2596
      %v2679 = vadd.f32 %v2310, %v2599
      %v2680 = vadd.f32 %v2311, %v2601
      %v2681 = vadd.f32 %v2312, %v2604
      %v2682 = vadd.f32 %v2313, %v2606
      %v2683 = vadd.f32 %v2314, %v2609
      %v2684 = vadd.f32 %v2315, %v2611
      %v2685 = vadd.f32 %v2316, %v2614
      %v2686 = vadd.f32 %v2317, %v2616
      %v2687 = vadd.f32 %v2318, %v2619
      %v2688 = vadd.f32 %v2319, %v2621
      %v2689 = vadd.f32 %v2320, %v2624
      %v2690 = vadd.f32 %v2321, %v2626
      %v2691 = vadd.f32 %v2322, %v2629
      %v2692 = vadd.f32 %v2323, %v2631
      %v2693 = vadd.f32 %v2324, %v2634
      %v2694 = vadd.f32 %v2325, %v2636
      %v2695 = vadd.f32 %v2326, %v2639
      %v2696 = vadd.f32 %v2327, %v2641
      %v2697 = vadd.f32 %v2328, %v2644
      %v2698 = vadd.f32 %v2329, %v2646
      %v2699 = vadd.f32 %v2330, %v2649
      %v2700 = vadd.f32 %v2331, %v2651
      %v2701 = vadd.f32 %v2332, %v2654
      %v2702 = vadd.f32 %v2333, %v2656
      %v2703 = vadd.f32 %v2334, %v2659
      %v2704 = vadd.f32 %v2335, %v2661
      %v2705 = vadd.f32 %v2336, %v2664
      %v2706 = vadd.f32 %v2337, %v2666
      %v2707 = vadd.f32 %v2338, %v2669
      %v2708 = vadd.f32 %v2339, %v2671
      %v2709 = vld [vmem:[%s192 + $0x10] sm:$0x8]
      %s2710 = scalar_lea.vmem %s1, 16
      %v2711 = vld [vmem:[%s2710] sm:$0x3]
      %v2713 = vunpack.c.l.b16 %v2709
      %v2714 = vpack.c.b16 %v2056, %v2713
      %vm2715 = vcmask 1044480
      %v2716 = vrot.slane %v2714, 3
      %v2717 = vrot.slane %v2093, 3
      %v2718 = vsel %vm2715, %v2716, %v2717
      %v2719 = vrot.slane %v2094, 3
      %v2720 = vsel %vm2715, %v2717, %v2719
      %v2721 = vrot.slane %v2095, 3
      %v2722 = vsel %vm2715, %v2719, %v2721
      %v2723 = vrot.slane %v2096, 3
      %v2724 = vsel %vm2715, %v2721, %v2723
      %v2725 = vrot.slane %v2097, 3
      %v2726 = vsel %vm2715, %v2723, %v2725
      %v2727 = vrot.slane %v2098, 3
      %v2728 = vsel %vm2715, %v2725, %v2727
      %v2729 = vrot.slane %v2099, 3
      %v2730 = vsel %vm2715, %v2727, %v2729
      %v2731 = vrot.slane %v2100, 3
      %v2732 = vsel %vm2715, %v2729, %v2731
      %v2733 = vrot.slane %v2101, 3
      %v2734 = vsel %vm2715, %v2731, %v2733
      %v2735 = vrot.slane %v2102, 3
      %v2736 = vsel %vm2715, %v2733, %v2735
      %v2737 = vrot.slane %v2103, 3
      %v2738 = vsel %vm2715, %v2735, %v2737
      %v2739 = vrot.slane %v2104, 3
      %v2740 = vsel %vm2715, %v2737, %v2739
      %v2741 = vrot.slane %v2105, 3
      %v2742 = vsel %vm2715, %v2739, %v2741
      %v2743 = vrot.slane %v2106, 3
      %v2744 = vsel %vm2715, %v2741, %v2743
      %v2745 = vrot.slane %v2107, 3
      %v2746 = vsel %vm2715, %v2743, %v2745
      %v2747 = vrot.slane %v2108, 3
      %v2748 = vsel %vm2715, %v2745, %v2747
      %v2749 = vrot.slane %v2109, 3
      %v2750 = vsel %vm2715, %v2747, %v2749
      %v2751 = vrot.slane %v2345, 3
      %v2752 = vsel %vm2715, %v2749, %v2751
      %v2754 = vsel %vm481, %v2718, 0
      %v2757 = vsel %vm481, %v2720, 0
      %v2760 = vsel %vm481, %v2722, 0
      %v2763 = vsel %vm481, %v2724, 0
      %v2766 = vsel %vm481, %v2726, 0
      %v2769 = vsel %vm481, %v2728, 0
      %v2772 = vsel %vm481, %v2730, 0
      %v2775 = vsel %vm481, %v2732, 0
      %v2778 = vsel %vm481, %v2734, 0
      %v2781 = vsel %vm481, %v2736, 0
      %v2784 = vsel %vm481, %v2738, 0
      %v2787 = vsel %vm481, %v2740, 0
      %v2790 = vsel %vm481, %v2742, 0
      %v2793 = vsel %vm481, %v2744, 0
      %v2796 = vsel %vm481, %v2746, 0
      %v2799 = vsel %vm481, %v2748, 0
      %v2802 = vsel %vm481, %v2750, 0
      %v2805 = vsel %vm481, %v2752, 0
      %v2808 = vsel %vm536, %v2711, 0
      %2810 = vmatpush.bf16.msra.mxu0 0
      %2811 = vmatpush.bf16.msra.mxu0 0
      %2812 = vmatpush.bf16.msra.mxu0 0
      %2813 = vmatpush.bf16.msra.mxu0 0
      %2814 = vmatpush.bf16.msra.mxu0 0
      %2815 = vmatpush.bf16.msra.mxu0 0
      %2816 = vmatpush.bf16.msra.mxu0 0
      %2817 = vmatpush.bf16.msra.mxu0 %v2808
      %2818 = vmatmul.bf16.gmra.mxu0 %v2754
      %v2819 = vpop.f32.mrf.mxu0
      %v2820 = vadd.f32 0.0, %v2819
      %v2821 = vpop.f32.mrf.mxu0
      %v2822 = vadd.f32 0.0, %v2821
      %2823 = vmatmul.bf16.gmra.mxu0 %v2757
      %v2824 = vpop.f32.mrf.mxu0
      %v2825 = vadd.f32 0.0, %v2824
      %v2826 = vpop.f32.mrf.mxu0
      %v2827 = vadd.f32 0.0, %v2826
      %2828 = vmatmul.bf16.gmra.mxu0 %v2760
      %v2829 = vpop.f32.mrf.mxu0
      %v2830 = vadd.f32 0.0, %v2829
      %v2831 = vpop.f32.mrf.mxu0
      %v2832 = vadd.f32 0.0, %v2831
      %2833 = vmatmul.bf16.gmra.mxu0 %v2763
      %v2834 = vpop.f32.mrf.mxu0
      %v2835 = vadd.f32 0.0, %v2834
      %v2836 = vpop.f32.mrf.mxu0
      %v2837 = vadd.f32 0.0, %v2836
      %2838 = vmatmul.bf16.gmra.mxu0 %v2766
      %v2839 = vpop.f32.mrf.mxu0
      %v2840 = vadd.f32 0.0, %v2839
      %v2841 = vpop.f32.mrf.mxu0
      %v2842 = vadd.f32 0.0, %v2841
      %2843 = vmatmul.bf16.gmra.mxu0 %v2769
      %v2844 = vpop.f32.mrf.mxu0
      %v2845 = vadd.f32 0.0, %v2844
      %v2846 = vpop.f32.mrf.mxu0
      %v2847 = vadd.f32 0.0, %v2846
      %2848 = vmatmul.bf16.gmra.mxu0 %v2772
      %v2849 = vpop.f32.mrf.mxu0
      %v2850 = vadd.f32 0.0, %v2849
      %v2851 = vpop.f32.mrf.mxu0
      %v2852 = vadd.f32 0.0, %v2851
      %2853 = vmatmul.bf16.gmra.mxu0 %v2775
      %v2854 = vpop.f32.mrf.mxu0
      %v2855 = vadd.f32 0.0, %v2854
      %v2856 = vpop.f32.mrf.mxu0
      %v2857 = vadd.f32 0.0, %v2856
      %2858 = vmatmul.bf16.gmra.mxu0 %v2778
      %v2859 = vpop.f32.mrf.mxu0
      %v2860 = vadd.f32 0.0, %v2859
      %v2861 = vpop.f32.mrf.mxu0
      %v2862 = vadd.f32 0.0, %v2861
      %2863 = vmatmul.bf16.gmra.mxu0 %v2781
      %v2864 = vpop.f32.mrf.mxu0
      %v2865 = vadd.f32 0.0, %v2864
      %v2866 = vpop.f32.mrf.mxu0
      %v2867 = vadd.f32 0.0, %v2866
      %2868 = vmatmul.bf16.gmra.mxu0 %v2784
      %v2869 = vpop.f32.mrf.mxu0
      %v2870 = vadd.f32 0.0, %v2869
      %v2871 = vpop.f32.mrf.mxu0
      %v2872 = vadd.f32 0.0, %v2871
      %2873 = vmatmul.bf16.gmra.mxu0 %v2787
      %v2874 = vpop.f32.mrf.mxu0
      %v2875 = vadd.f32 0.0, %v2874
      %v2876 = vpop.f32.mrf.mxu0
      %v2877 = vadd.f32 0.0, %v2876
      %2878 = vmatmul.bf16.gmra.mxu0 %v2790
      %v2879 = vpop.f32.mrf.mxu0
      %v2880 = vadd.f32 0.0, %v2879
      %v2881 = vpop.f32.mrf.mxu0
      %v2882 = vadd.f32 0.0, %v2881
      %2883 = vmatmul.bf16.gmra.mxu0 %v2793
      %v2884 = vpop.f32.mrf.mxu0
      %v2885 = vadd.f32 0.0, %v2884
      %v2886 = vpop.f32.mrf.mxu0
      %v2887 = vadd.f32 0.0, %v2886
      %2888 = vmatmul.bf16.gmra.mxu0 %v2796
      %v2889 = vpop.f32.mrf.mxu0
      %v2890 = vadd.f32 0.0, %v2889
      %v2891 = vpop.f32.mrf.mxu0
      %v2892 = vadd.f32 0.0, %v2891
      %2893 = vmatmul.bf16.gmra.mxu0 %v2799
      %v2894 = vpop.f32.mrf.mxu0
      %v2895 = vadd.f32 0.0, %v2894
      %v2896 = vpop.f32.mrf.mxu0
      %v2897 = vadd.f32 0.0, %v2896
      %2898 = vmatmul.bf16.gmra.mxu0 %v2802
      %v2899 = vpop.f32.mrf.mxu0
      %v2900 = vadd.f32 0.0, %v2899
      %v2901 = vpop.f32.mrf.mxu0
      %v2902 = vadd.f32 0.0, %v2901
      %2903 = vmatmul.bf16.gmra.mxu0 %v2805
      %v2904 = vpop.f32.mrf.mxu0
      %v2905 = vadd.f32 0.0, %v2904
      %v2906 = vpop.f32.mrf.mxu0
      %v2907 = vadd.f32 0.0, %v2906
      %2908 = vdwg.mxu0
      %v2909 = vadd.f32 %v2673, %v2820
      %v2910 = vadd.f32 %v2674, %v2822
      %v2911 = vadd.f32 %v2675, %v2825
      %v2912 = vadd.f32 %v2676, %v2827
      %v2913 = vadd.f32 %v2677, %v2830
      %v2914 = vadd.f32 %v2678, %v2832
      %v2915 = vadd.f32 %v2679, %v2835
      %v2916 = vadd.f32 %v2680, %v2837
      %v2917 = vadd.f32 %v2681, %v2840
      %v2918 = vadd.f32 %v2682, %v2842
      %v2919 = vadd.f32 %v2683, %v2845
      %v2920 = vadd.f32 %v2684, %v2847
      %v2921 = vadd.f32 %v2685, %v2850
      %v2922 = vadd.f32 %v2686, %v2852
      %v2923 = vadd.f32 %v2687, %v2855
      %v2924 = vadd.f32 %v2688, %v2857
      %v2925 = vadd.f32 %v2689, %v2860
      %v2926 = vadd.f32 %v2690, %v2862
      %v2927 = vadd.f32 %v2691, %v2865
      %v2928 = vadd.f32 %v2692, %v2867
      %v2929 = vadd.f32 %v2693, %v2870
      %v2930 = vadd.f32 %v2694, %v2872
      %v2931 = vadd.f32 %v2695, %v2875
      %v2932 = vadd.f32 %v2696, %v2877
      %v2933 = vadd.f32 %v2697, %v2880
      %v2934 = vadd.f32 %v2698, %v2882
      %v2935 = vadd.f32 %v2699, %v2885
      %v2936 = vadd.f32 %v2700, %v2887
      %v2937 = vadd.f32 %v2701, %v2890
      %v2938 = vadd.f32 %v2702, %v2892
      %v2939 = vadd.f32 %v2703, %v2895
      %v2940 = vadd.f32 %v2704, %v2897
      %v2941 = vadd.f32 %v2705, %v2900
      %v2942 = vadd.f32 %v2706, %v2902
      %v2943 = vadd.f32 %v2707, %v2905
      %v2944 = vadd.f32 %v2708, %v2907
      %v2945 = vld [vmem:[%s2] sm:$0x1]
      %v2947 = vperm.slane %v2945, 0
      %v2949 = vmul.f32 %v2909, %v2947
      %v2950 = vmul.f32 %v2910, %v2947
      %v2951 = vmul.f32 %v2911, %v2947
      %v2952 = vmul.f32 %v2912, %v2947
      %v2953 = vmul.f32 %v2913, %v2947
      %v2954 = vmul.f32 %v2914, %v2947
      %v2955 = vmul.f32 %v2915, %v2947
      %v2956 = vmul.f32 %v2916, %v2947
      %v2957 = vmul.f32 %v2917, %v2947
      %v2958 = vmul.f32 %v2918, %v2947
      %v2959 = vmul.f32 %v2919, %v2947
      %v2960 = vmul.f32 %v2920, %v2947
      %v2961 = vmul.f32 %v2921, %v2947
      %v2962 = vmul.f32 %v2922, %v2947
      %v2963 = vmul.f32 %v2923, %v2947
      %v2964 = vmul.f32 %v2924, %v2947
      %v2965 = vmul.f32 %v2925, %v2947
      %v2966 = vmul.f32 %v2926, %v2947
      %v2967 = vmul.f32 %v2927, %v2947
      %v2968 = vmul.f32 %v2928, %v2947
      %v2969 = vmul.f32 %v2929, %v2947
      %v2970 = vmul.f32 %v2930, %v2947
      %v2971 = vmul.f32 %v2931, %v2947
      %v2972 = vmul.f32 %v2932, %v2947
      %v2973 = vmul.f32 %v2933, %v2947
      %v2974 = vmul.f32 %v2934, %v2947
      %v2975 = vmul.f32 %v2935, %v2947
      %v2976 = vmul.f32 %v2936, %v2947
      %v2977 = vmul.f32 %v2937, %v2947
      %v2978 = vmul.f32 %v2938, %v2947
      %v2979 = vmul.f32 %v2939, %v2947
      %v2980 = vmul.f32 %v2940, %v2947
      %v2981 = vmul.f32 %v2941, %v2947
      %v2982 = vmul.f32 %v2942, %v2947
      %v2983 = vmul.f32 %v2943, %v2947
      %v2984 = vmul.f32 %v2944, %v2947
      %v2985 = vld [vmem:[%s3] sm:$0x1]
      %v2987 = vperm.slane %v2985, 0
      %v2989 = vadd.f32 %v2949, %v2987
      %v2990 = vadd.f32 %v2950, %v2987
      %v2991 = vadd.f32 %v2951, %v2987
      %v2992 = vadd.f32 %v2952, %v2987
      %v2993 = vadd.f32 %v2953, %v2987
      %v2994 = vadd.f32 %v2954, %v2987
      %v2995 = vadd.f32 %v2955, %v2987
      %v2996 = vadd.f32 %v2956, %v2987
      %v2997 = vadd.f32 %v2957, %v2987
      %v2998 = vadd.f32 %v2958, %v2987
      %v2999 = vadd.f32 %v2959, %v2987
      %v3000 = vadd.f32 %v2960, %v2987
      %v3001 = vadd.f32 %v2961, %v2987
      %v3002 = vadd.f32 %v2962, %v2987
      %v3003 = vadd.f32 %v2963, %v2987
      %v3004 = vadd.f32 %v2964, %v2987
      %v3005 = vadd.f32 %v2965, %v2987
      %v3006 = vadd.f32 %v2966, %v2987
      %v3007 = vadd.f32 %v2967, %v2987
      %v3008 = vadd.f32 %v2968, %v2987
      %v3009 = vadd.f32 %v2969, %v2987
      %v3010 = vadd.f32 %v2970, %v2987
      %v3011 = vadd.f32 %v2971, %v2987
      %v3012 = vadd.f32 %v2972, %v2987
      %v3013 = vadd.f32 %v2973, %v2987
      %v3014 = vadd.f32 %v2974, %v2987
      %v3015 = vadd.f32 %v2975, %v2987
      %v3016 = vadd.f32 %v2976, %v2987
      %v3017 = vadd.f32 %v2977, %v2987
      %v3018 = vadd.f32 %v2978, %v2987
      %v3019 = vadd.f32 %v2979, %v2987
      %v3020 = vadd.f32 %v2980, %v2987
      %v3021 = vadd.f32 %v2981, %v2987
      %v3022 = vadd.f32 %v2982, %v2987
      %v3023 = vadd.f32 %v2983, %v2987
      %v3024 = vadd.f32 %v2984, %v2987
      %v3025 = vmax.f32 %v2989, 0.0
      %v3026 = vmax.f32 %v2990, 0.0
      %v3027 = vmax.f32 %v2991, 0.0
      %v3028 = vmax.f32 %v2992, 0.0
      %v3029 = vmax.f32 %v2993, 0.0
      %v3030 = vmax.f32 %v2994, 0.0
      %v3031 = vmax.f32 %v2995, 0.0
      %v3032 = vmax.f32 %v2996, 0.0
      %v3033 = vmax.f32 %v2997, 0.0
      %v3034 = vmax.f32 %v2998, 0.0
      %v3035 = vmax.f32 %v2999, 0.0
      %v3036 = vmax.f32 %v3000, 0.0
      %v3037 = vmax.f32 %v3001, 0.0
      %v3038 = vmax.f32 %v3002, 0.0
      %v3039 = vmax.f32 %v3003, 0.0
      %v3040 = vmax.f32 %v3004, 0.0
      %v3041 = vmax.f32 %v3005, 0.0
      %v3042 = vmax.f32 %v3006, 0.0
      %v3043 = vmax.f32 %v3007, 0.0
      %v3044 = vmax.f32 %v3008, 0.0
      %v3045 = vmax.f32 %v3009, 0.0
      %v3046 = vmax.f32 %v3010, 0.0
      %v3047 = vmax.f32 %v3011, 0.0
      %v3048 = vmax.f32 %v3012, 0.0
      %v3049 = vmax.f32 %v3013, 0.0
      %v3050 = vmax.f32 %v3014, 0.0
      %v3051 = vmax.f32 %v3015, 0.0
      %v3052 = vmax.f32 %v3016, 0.0
      %v3053 = vmax.f32 %v3017, 0.0
      %v3054 = vmax.f32 %v3018, 0.0
      %v3055 = vmax.f32 %v3019, 0.0
      %v3056 = vmax.f32 %v3020, 0.0
      %v3057 = vmax.f32 %v3021, 0.0
      %v3058 = vmax.f32 %v3022, 0.0
      %v3059 = vmax.f32 %v3023, 0.0
      %v3060 = vmax.f32 %v3024, 0.0
      %v3061 = vpack.c.bf16 %v3025, %v3025
      %v3062 = vpack.c.bf16 %v3026, %v3026
      %v3063 = vpack.c.bf16 %v3027, %v3027
      %v3064 = vpack.c.bf16 %v3028, %v3028
      %v3065 = vpack.c.bf16 %v3029, %v3029
      %v3066 = vpack.c.bf16 %v3030, %v3030
      %v3067 = vpack.c.bf16 %v3031, %v3031
      %v3068 = vpack.c.bf16 %v3032, %v3032
      %v3069 = vpack.c.bf16 %v3033, %v3033
      %v3070 = vpack.c.bf16 %v3034, %v3034
      %v3071 = vpack.c.bf16 %v3035, %v3035
      %v3072 = vpack.c.bf16 %v3036, %v3036
      %v3073 = vpack.c.bf16 %v3037, %v3037
      %v3074 = vpack.c.bf16 %v3038, %v3038
      %v3075 = vpack.c.bf16 %v3039, %v3039
      %v3076 = vpack.c.bf16 %v3040, %v3040
      %v3077 = vpack.c.bf16 %v3041, %v3041
      %v3078 = vpack.c.bf16 %v3042, %v3042
      %v3079 = vpack.c.bf16 %v3043, %v3043
      %v3080 = vpack.c.bf16 %v3044, %v3044
      %v3081 = vpack.c.bf16 %v3045, %v3045
      %v3082 = vpack.c.bf16 %v3046, %v3046
      %v3083 = vpack.c.bf16 %v3047, %v3047
      %v3084 = vpack.c.bf16 %v3048, %v3048
      %v3085 = vpack.c.bf16 %v3049, %v3049
      %v3086 = vpack.c.bf16 %v3050, %v3050
      %v3087 = vpack.c.bf16 %v3051, %v3051
      %v3088 = vpack.c.bf16 %v3052, %v3052
      %v3089 = vpack.c.bf16 %v3053, %v3053
      %v3090 = vpack.c.bf16 %v3054, %v3054
      %v3091 = vpack.c.bf16 %v3055, %v3055
      %v3092 = vpack.c.bf16 %v3056, %v3056
      %v3093 = vpack.c.bf16 %v3057, %v3057
      %v3094 = vpack.c.bf16 %v3058, %v3058
      %v3095 = vpack.c.bf16 %v3059, %v3059
      %v3096 = vpack.c.bf16 %v3060, %v3060
      %3097 = vst [vmem:[%s197] sm:$0xf] %v3061
      %3098 = vst [vmem:[%s197 + $0x4] sm:$0xf] %v3062
      %3099 = vst [vmem:[%s197 + $0x8] sm:$0xf] %v3063
      %3100 = vst [vmem:[%s197 + $0xc] sm:$0xf] %v3064
      %3101 = vst [vmem:[%s197 + $0x10] sm:$0xf] %v3065
      %3102 = vst [vmem:[%s197 + $0x14] sm:$0xf] %v3066
      %3103 = vst [vmem:[%s197 + $0x18] sm:$0xf] %v3067
      %3104 = vst [vmem:[%s197 + $0x1c] sm:$0xf] %v3068
      %3105 = vst [vmem:[%s197 + $0x20] sm:$0xf] %v3069
      %3106 = vst [vmem:[%s197 + $0x24] sm:$0xf] %v3070
      %3107 = vst [vmem:[%s197 + $0x28] sm:$0xf] %v3071
      %3108 = vst [vmem:[%s197 + $0x2c] sm:$0xf] %v3072
      %3109 = vst [vmem:[%s197 + $0x30] sm:$0xf] %v3073
      %3110 = vst [vmem:[%s197 + $0x34] sm:$0xf] %v3074
      %3111 = vst [vmem:[%s197 + $0x38] sm:$0xf] %v3075
      %3112 = vst [vmem:[%s197 + $0x3c] sm:$0xf] %v3076
      %3113 = vst [vmem:[%s197 + $0x40] sm:$0xf] %v3077
      %3114 = vst [vmem:[%s197 + $0x44] sm:$0xf] %v3078
      %3115 = vst [vmem:[%s197 + $0x48] sm:$0xf] %v3079
      %3116 = vst [vmem:[%s197 + $0x4c] sm:$0xf] %v3080
      %3117 = vst [vmem:[%s197 + $0x50] sm:$0xf] %v3081
      %3118 = vst [vmem:[%s197 + $0x54] sm:$0xf] %v3082
      %3119 = vst [vmem:[%s197 + $0x58] sm:$0xf] %v3083
      %3120 = vst [vmem:[%s197 + $0x5c] sm:$0xf] %v3084
      %3121 = vst [vmem:[%s197 + $0x60] sm:$0xf] %v3085
      %3122 = vst [vmem:[%s197 + $0x64] sm:$0xf] %v3086
      %3123 = vst [vmem:[%s197 + $0x68] sm:$0xf] %v3087
      %3124 = vst [vmem:[%s197 + $0x6c] sm:$0xf] %v3088
      %3125 = vst [vmem:[%s197 + $0x70] sm:$0xf] %v3089
      %3126 = vst [vmem:[%s197 + $0x74] sm:$0xf] %v3090
      %3127 = vst [vmem:[%s197 + $0x78] sm:$0xf] %v3091
      %3128 = vst [vmem:[%s197 + $0x7c] sm:$0xf] %v3092
      %3129 = vst [vmem:[%s197 + $0x80] sm:$0xf] %v3093
      %3130 = vst [vmem:[%s197 + $0x84] sm:$0xf] %v3094
      %3131 = vst [vmem:[%s197 + $0x88] sm:$0xf] %v3095
      %3132 = vst [vmem:[%s197 + $0x8c] sm:$0xf] %v3096
      %p3133 = scmp.lt.s32.totalorder %s15, 1
      %s3134 = scalar_select %p3133, %s15, 1
      %s3135 = smul.addr %s3134, 36
      %s3136 = smul.addr %s3135, 4
      %s3137 = scalar_lea.vmem %s4, %s3136
      // Predicated region
      $region37: #{basic_conv2d.1} parent=35 // pred_check
        %p3138 = pneg %p122
      $region38: #{basic_conv2d.1} parent=35 // pred_check_branch
        %3140 = sbr.rel (%p3138) target = $region40
      $region39: #{basic_conv2d.1} parent=35 // pred_region
        _
      $region40: #{basic_conv2d.1} parent=35 // pred_fallthru
        _
    $region36: #{basic_conv2d.1} parent=5 // pred_fallthru
      _
    %p3141 = scmp.le.s32.totalorder 2, %s10
    // Predicated region
    $region41: #{basic_conv2d.1} parent=5 // pred_check
      %p3142 = pneg %p3141
    $region42: #{basic_conv2d.1} parent=5 // pred_check_branch
      %3144 = sbr.rel (%p3142) target = $region44
    $region43: #{basic_conv2d.1} parent=5 // pred_region
      %s3145 = ssub.s32 %s10, 2
      // Predicated region
      $region45: #{basic_conv2d.1} parent=43 // pred_check
        %p3146 = pneg %p128
      $region46: #{basic_conv2d.1} parent=43 // pred_check_branch
        %3148 = sbr.rel (%p3146) target = $region48
      $region47: #{basic_conv2d.1} parent=43 // pred_region
        %p3149 = scmp.lt.s32.totalorder %s16, 1
        %s3150 = scalar_select %p3149, %s16, 1
        %s3151 = smul.addr %s3150, 36
        %s3152 = smul.addr %s3151, 4
        %s3153 = scalar_lea.vmem %s4, %s3152
      $region48: #{basic_conv2d.1} parent=43 // pred_fallthru
        _
    $region44: #{basic_conv2d.1} parent=5 // pred_fallthru
      _
  $region6: #{basic_conv2d.1} parent=0 // loop_footer
    %s14 = sadd.s32 1, %s10
  $region7: #{basic_conv2d.1} parent=0 // loop_footer_branch
    %9 = sbr.rel target = $region3
  $region8: #{basic_conv2d.1} parent=0 // loop_exit
    _

</llo_original>
